<compile_context>
chip_gen: v7x
topology: tpu7x:2x2x1
jax: 0.10.0
libtpu: 0.0.40
codegen_flags: <defaults>
</compile_context>

<pallas_src>
import functools

import jax
import jax.numpy as jnp
from jax.experimental import pallas as pl
from jax.experimental.pallas import tpu as pltpu


def _vae_fwd_kernel(
    x_ref, eps_ref,
    w1_ref, b1_ref, wmv_ref, bmv_ref,
    w2_ref, b2_ref, w3_ref, b3_ref,
    recon_ref, mv_ref,
):
    bf16 = jnp.bfloat16
    Lp = mv_ref.shape[-1] // 2           # padded latent width (lane-dense, 128)
    L = eps_ref.shape[-1]                # logical latent width

    x = x_ref[...]                       # (tb, D) f32

    # ---- encoder: Linear(D,H) -> ReLU -------------------------------------
    h = jnp.dot(x.astype(bf16), w1_ref[...],
                preferred_element_type=jnp.float32) + b1_ref[...]
    h = jnp.maximum(h, 0.0)              # ReLU in f32

    # ---- fused mean/log_var projection: one (H, 2*Lp) matmul ---------------
    mv = jnp.dot(h.astype(bf16), wmv_ref[...],
                 preferred_element_type=jnp.float32) + bmv_ref[...]
    mean = mv[:, :Lp]                    # lane-group-aligned static slices
    log_var = mv[:, Lp:]

    # ---- reparameterization (exact semantics of the reference forward):
    #   sampled_z = randn_like(mean) * log_var + mean
    # eps arrives un-padded (tb, L); pad to Lp in VMEM (padded lanes of
    # mean/log_var are zero, so the padded eps lanes contribute nothing).
    eps = eps_ref[...]                   # (tb, L) f32
    if Lp > L:
        eps_p = jnp.concatenate(
            [eps, jnp.zeros((eps.shape[0], Lp - L), eps.dtype)], axis=-1)
    else:
        eps_p = eps
    z = eps_p * log_var + mean           # f32 elementwise; padded lanes stay 0

    # ---- decoder: Linear(Lp,H) -> ReLU -> Linear(H,D) -> sigmoid -----------
    h2 = jnp.dot(z.astype(bf16), w2_ref[...],
                 preferred_element_type=jnp.float32) + b2_ref[...]
    h2 = jnp.maximum(h2, 0.0)
    logits = jnp.dot(h2.astype(bf16), w3_ref[...],
                     preferred_element_type=jnp.float32) + b3_ref[...]
    recon_ref[...] = jax.nn.sigmoid(logits)

    # Single contiguous 2*Lp-lane store; split into mean / log_var outside.
    mv_ref[...] = mv


def _round_up(v, m):
    return (v + m - 1) // m * m


@functools.partial(jax.jit, static_argnames=("tile_b",))
def vae_forward(x, eps, params, *, tile_b=128):
    """Fused VAE forward Pallas kernel.

    x:      (N, D) f32 flattened input
    eps:    (N, L) f32 standard-normal samples (torch.randn_like equivalent)
    params: dict of f32 weights/biases, Linear weights stored (in, out)
    Returns (reconstructed_x (N, D), mean (N, L), log_var (N, L)).
    """
    N, D = x.shape
    L = eps.shape[1]
    H = params["w1"].shape[1]
    Lp = max(_round_up(L, 128), 128)     # pad latent to a full lane width
    assert N % tile_b == 0 and tile_b % 8 == 0, \
        "tile_b must divide N and be a multiple of 8"

    f32, bf16 = jnp.float32, jnp.bfloat16

    # --- weight prep (outside the kernel, cheap & jit-cached):
    #     fuse mean/log_var projections, zero-pad latent, bf16-cast matmul weights.
    def pad_cols(w):
        return jnp.pad(w, ((0, 0), (0, Lp - w.shape[1])))

    w1 = params["w1"].astype(bf16)                                     # (D, H)
    b1 = params["b1"].astype(f32)                                      # (1, H)
    wmv = jnp.concatenate([pad_cols(params["wm"]),
                           pad_cols(params["wv"])], axis=1).astype(bf16)   # (H, 2*Lp)
    bmv = jnp.concatenate([pad_cols(params["bm"]),
                           pad_cols(params["bv"])], axis=1).astype(f32)    # (1, 2*Lp)
    w2 = jnp.pad(params["w2"], ((0, Lp - L), (0, 0))).astype(bf16)     # (Lp, H) zero rows
    b2 = params["b2"].astype(f32)                                      # (1, H)
    w3 = params["w3"].astype(bf16)                                     # (H, D)
    b3 = params["b3"].astype(f32)                                      # (1, D)

    grid = (N // tile_b,)

    # Weights/biases are grid-resident (same block every iteration).
    def resident(shape):
        return pl.BlockSpec(shape, lambda i: (0, 0))

    in_specs = [
        pl.BlockSpec((tile_b, D), lambda i: (i, 0)),     # x
        pl.BlockSpec((tile_b, L), lambda i: (i, 0)),     # eps (raw, un-padded)
        resident((D, H)), resident((1, H)),              # w1, b1
        resident((H, 2 * Lp)), resident((1, 2 * Lp)),    # wmv, bmv (fused)
        resident((Lp, H)), resident((1, H)),             # w2, b2
        resident((H, D)), resident((1, D)),              # w3, b3
    ]
    out_specs = [
        pl.BlockSpec((tile_b, D), lambda i: (i, 0)),     # reconstructed_x
        pl.BlockSpec((tile_b, 2 * Lp), lambda i: (i, 0)),  # [mean | log_var] slab
    ]
    out_shape = [
        jax.ShapeDtypeStruct((N, D), f32),
        jax.ShapeDtypeStruct((N, 2 * Lp), f32),
    ]

    # Advisory cost hint so XLA schedules around the custom call sensibly.
    flops = 2 * N * (D * H + H * 2 * Lp + Lp * H + H * D)
    transcendentals = N * D                                   # sigmoid
    bytes_accessed = (
        N * D * 4 + N * L * 4                                 # x, eps (un-padded)
        + (D * H + H * 2 * Lp + Lp * H + H * D) * 2           # bf16 weights
        + (H + 2 * Lp + H + D) * 4                            # f32 biases
        + (N * D + N * 2 * Lp) * 4                            # outputs
    )

    recon, mv = pl.pallas_call(
        _vae_fwd_kernel,
        out_shape=out_shape,
        grid_spec=pltpu.PrefetchScalarGridSpec(
            num_scalar_prefetch=0,
            grid=grid,
            in_specs=in_specs,
            out_specs=out_specs,
        ),
        compiler_params=pltpu.CompilerParams(
            dimension_semantics=("parallel",),
            # TODO(synk): re-budget against 64 MiB physical VMEM on v7x if the
            # model scales to real MNIST/hidden sizes (weights are double-buffered).
            vmem_limit_bytes=32 * 1024 * 1024,
        ),
        cost_estimate=pl.CostEstimate(
            flops=flops,
            transcendentals=transcendentals,
            bytes_accessed=bytes_accessed,
        ),
    )(x, eps, w1, b1, wmv, bmv, w2, b2, w3, b3)

    # Split the combined [mean | log_var] slab and strip latent padding outside
    # the kernel (lazy slices at the consumer).
    return recon, mv[:, :L], mv[:, Lp:Lp + L]


def init_params(key, D, H, L):
    """Deterministic parameter init (Linear weights stored as (in, out)), f32."""
    ks = jax.random.split(key, 10)

    def lin(kw, kb, fan_in, fan_out):
        bound = 1.0 / jnp.sqrt(fan_in)
        w = jax.random.uniform(kw, (fan_in, fan_out), jnp.float32, -bound, bound)
        b = jax.random.uniform(kb, (1, fan_out), jnp.float32, -bound, bound)
        return w, b

    w1, b1 = lin(ks[0], ks[1], D, H)
    wm, bm = lin(ks[2], ks[3], H, L)
    wv, bv = lin(ks[4], ks[5], H, L)
    w2, b2 = lin(ks[6], ks[7], L, H)
    w3, b3 = lin(ks[8], ks[9], H, D)
    return dict(w1=w1, b1=b1, wm=wm, bm=bm, wv=wv, bv=bv,
                w2=w2, b2=b2, w3=w3, b3=b3)


def vae_forward_ref(x, eps, p):
    """Pure-JAX reference mirroring the kernel's bf16-matmul / f32-accumulate math."""
    bf16 = jnp.bfloat16

    def mm(a, w):
        return jnp.dot(a.astype(bf16), w.astype(bf16),
                       preferred_element_type=jnp.float32)

    h = jnp.maximum(mm(x, p["w1"]) + p["b1"], 0.0)
    mean = mm(h, p["wm"]) + p["bm"]
    log_var = mm(h, p["wv"]) + p["bv"]
    # NOTE: faithful to the reference forward(): z = randn * log_var + mean
    # (not the standard z = eps * exp(0.5*log_var) + mean).
    z = eps * log_var + mean
    h2 = jnp.maximum(mm(z, p["w2"]) + p["b2"], 0.0)
    recon = jax.nn.sigmoid(mm(h2, p["w3"]) + p["b3"])
    return recon, mean, log_var


if __name__ == "__main__":
    # Small MNIST-like-but-tiny shapes: batch N=256 (2 grid steps of tile_b=128,
    # so both v7x TensorCores get work), flattened input D=256, hidden H=128,
    # logical latent L=32 (padded to 128 lanes inside the kernel).
    N, D, H, L = 256, 256, 128, 32

    key = jax.random.PRNGKey(0)
    k_params, k_x, k_eps = jax.random.split(key, 3)

    params = init_params(k_params, D, H, L)
    # Inputs in [0, 1] like normalized MNIST pixels.
    x = jax.random.uniform(k_x, (N, D), jnp.float32)
    # torch.randn_like(mean) equivalent: deterministic standard-normal samples.
    eps = jax.random.normal(k_eps, (N, L), jnp.float32)

    recon, mean, log_var = vae_forward(x, eps, params, tile_b=128)
    jax.block_until_ready((recon, mean, log_var))

    recon_r, mean_r, logvar_r = vae_forward_ref(x, eps, params)
    assert recon.shape == (N, D) and mean.shape == (N, L) and log_var.shape == (N, L)
    assert jnp.allclose(recon, recon_r, atol=5e-3, rtol=5e-3)
    assert jnp.allclose(mean, mean_r, atol=5e-3, rtol=5e-3)
    assert jnp.allclose(log_var, logvar_r, atol=5e-3, rtol=5e-3)

    print("KERNEL_OK")
</pallas_src>

<mosaic_0001>
module attributes {stable_mosaic.version = 11 : i64} {
  func.func @_vae_fwd_kernel(%arg0: i32, %arg1: memref<128x256xf32, #tpu.memory_space<vmem>>, %arg2: memref<128x32xf32, #tpu.memory_space<vmem>>, %arg3: memref<256x128xbf16, #tpu.memory_space<vmem>>, %arg4: memref<1x128xf32, #tpu.memory_space<vmem>>, %arg5: memref<128x256xbf16, #tpu.memory_space<vmem>>, %arg6: memref<1x256xf32, #tpu.memory_space<vmem>>, %arg7: memref<128x128xbf16, #tpu.memory_space<vmem>>, %arg8: memref<1x128xf32, #tpu.memory_space<vmem>>, %arg9: memref<128x256xbf16, #tpu.memory_space<vmem>>, %arg10: memref<1x256xf32, #tpu.memory_space<vmem>>, %arg11: memref<128x256xf32, #tpu.memory_space<vmem>>, %arg12: memref<128x256xf32, #tpu.memory_space<vmem>>) attributes {dimension_semantics = [#tpu.dimension_semantics<parallel>], iteration_bounds = array<i64: 2>, scalar_prefetch = 0 : i64, scratch_operands = 0 : i64, tpu.core_type = #tpu.core_type<tc>, window_params = [{transform_indices = @transform_0, window_bounds = array<i64: 128, 256>}, {transform_indices = @transform_1, window_bounds = array<i64: 128, 32>}, {pipeline_mode = #tpu.pipeline_mode<synchronous>, transform_indices = @transform_2, window_bounds = array<i64: 256, 128>}, {pipeline_mode = #tpu.pipeline_mode<synchronous>, transform_indices = @transform_3, window_bounds = array<i64: 1, 128>}, {pipeline_mode = #tpu.pipeline_mode<synchronous>, transform_indices = @transform_4, window_bounds = array<i64: 128, 256>}, {pipeline_mode = #tpu.pipeline_mode<synchronous>, transform_indices = @transform_5, window_bounds = array<i64: 1, 256>}, {pipeline_mode = #tpu.pipeline_mode<synchronous>, transform_indices = @transform_6, window_bounds = array<i64: 128, 128>}, {pipeline_mode = #tpu.pipeline_mode<synchronous>, transform_indices = @transform_7, window_bounds = array<i64: 1, 128>}, {pipeline_mode = #tpu.pipeline_mode<synchronous>, transform_indices = @transform_8, window_bounds = array<i64: 128, 256>}, {pipeline_mode = #tpu.pipeline_mode<synchronous>, transform_indices = @transform_9, window_bounds = array<i64: 1, 256>}, {transform_indices = @transform_10, window_bounds = array<i64: 128, 256>}, {transform_indices = @transform_11, window_bounds = array<i64: 128, 256>}]} {
    %c0 = arith.constant 0 : index
    %c0_0 = arith.constant 0 : index
    %0 = vector.load %arg1[%c0, %c0_0] : memref<128x256xf32, #tpu.memory_space<vmem>>, vector<128x256xf32>
    %1 = arith.truncf %0 : vector<128x256xf32> to vector<128x256xbf16>
    %c0_1 = arith.constant 0 : index
    %c0_2 = arith.constant 0 : index
    %2 = vector.load %arg3[%c0_1, %c0_2] : memref<256x128xbf16, #tpu.memory_space<vmem>>, vector<256x128xbf16>
    %cst = arith.constant dense<0.000000e+00> : vector<128x128xf32>
    %3 = tpu.matmul %1, %2, %cst {dimension_numbers = #tpu.dot_dimension_numbers<[1], [0], [0], [1], [0, 0, 1, 1], [], []>} : vector<128x256xbf16>, vector<256x128xbf16>, vector<128x128xf32> -> vector<128x128xf32>
    %c0_3 = arith.constant 0 : index
    %c0_4 = arith.constant 0 : index
    %4 = vector.load %arg4[%c0_3, %c0_4] : memref<1x128xf32, #tpu.memory_space<vmem>>, vector<1x128xf32>
    %5 = vector.broadcast %4 : vector<1x128xf32> to vector<128x128xf32>
    %6 = arith.addf %3, %5 : vector<128x128xf32>
    %cst_5 = arith.constant 0.000000e+00 : f32
    %7 = vector.broadcast %cst_5 : f32 to vector<128x128xf32>
    %8 = arith.maximumf %6, %7 : vector<128x128xf32>
    %9 = arith.truncf %8 : vector<128x128xf32> to vector<128x128xbf16>
    %c0_6 = arith.constant 0 : index
    %c0_7 = arith.constant 0 : index
    %10 = vector.load %arg5[%c0_6, %c0_7] : memref<128x256xbf16, #tpu.memory_space<vmem>>, vector<128x256xbf16>
    %cst_8 = arith.constant dense<0.000000e+00> : vector<128x256xf32>
    %11 = tpu.matmul %9, %10, %cst_8 {dimension_numbers = #tpu.dot_dimension_numbers<[1], [0], [0], [1], [0, 0, 1, 1], [], []>} : vector<128x128xbf16>, vector<128x256xbf16>, vector<128x256xf32> -> vector<128x256xf32>
    %c0_9 = arith.constant 0 : index
    %c0_10 = arith.constant 0 : index
    %12 = vector.load %arg6[%c0_9, %c0_10] : memref<1x256xf32, #tpu.memory_space<vmem>>, vector<1x256xf32>
    %13 = vector.broadcast %12 : vector<1x256xf32> to vector<128x256xf32>
    %14 = arith.addf %11, %13 : vector<128x256xf32>
    %15 = vector.extract_strided_slice %14 {offsets = [0, 0], sizes = [128, 128], strides = [1, 1]} : vector<128x256xf32> to vector<128x128xf32>
    %16 = vector.extract_strided_slice %14 {offsets = [0, 128], sizes = [128, 128], strides = [1, 1]} : vector<128x256xf32> to vector<128x128xf32>
    %c0_11 = arith.constant 0 : index
    %c0_12 = arith.constant 0 : index
    %17 = vector.load %arg2[%c0_11, %c0_12] : memref<128x32xf32, #tpu.memory_space<vmem>>, vector<128x32xf32>
    %cst_13 = arith.constant 0.000000e+00 : f32
    %18 = vector.broadcast %cst_13 : f32 to vector<128x96xf32>
    %19 = tpu.concatenate %17, %18 in 1 : vector<128x32xf32>, vector<128x96xf32> -> vector<128x128xf32>
    %20 = arith.mulf %19, %16 : vector<128x128xf32>
    %21 = arith.addf %20, %15 : vector<128x128xf32>
    %22 = arith.truncf %21 : vector<128x128xf32> to vector<128x128xbf16>
    %c0_14 = arith.constant 0 : index
    %c0_15 = arith.constant 0 : index
    %23 = vector.load %arg7[%c0_14, %c0_15] : memref<128x128xbf16, #tpu.memory_space<vmem>>, vector<128x128xbf16>
    %cst_16 = arith.constant dense<0.000000e+00> : vector<128x128xf32>
    %24 = tpu.matmul %22, %23, %cst_16 {dimension_numbers = #tpu.dot_dimension_numbers<[1], [0], [0], [1], [0, 0, 1, 1], [], []>} : vector<128x128xbf16>, vector<128x128xbf16>, vector<128x128xf32> -> vector<128x128xf32>
    %c0_17 = arith.constant 0 : index
    %c0_18 = arith.constant 0 : index
    %25 = vector.load %arg8[%c0_17, %c0_18] : memref<1x128xf32, #tpu.memory_space<vmem>>, vector<1x128xf32>
    %26 = vector.broadcast %25 : vector<1x128xf32> to vector<128x128xf32>
    %27 = arith.addf %24, %26 : vector<128x128xf32>
    %cst_19 = arith.constant 0.000000e+00 : f32
    %28 = vector.broadcast %cst_19 : f32 to vector<128x128xf32>
    %29 = arith.maximumf %27, %28 : vector<128x128xf32>
    %30 = arith.truncf %29 : vector<128x128xf32> to vector<128x128xbf16>
    %c0_20 = arith.constant 0 : index
    %c0_21 = arith.constant 0 : index
    %31 = vector.load %arg9[%c0_20, %c0_21] : memref<128x256xbf16, #tpu.memory_space<vmem>>, vector<128x256xbf16>
    %cst_22 = arith.constant dense<0.000000e+00> : vector<128x256xf32>
    %32 = tpu.matmul %30, %31, %cst_22 {dimension_numbers = #tpu.dot_dimension_numbers<[1], [0], [0], [1], [0, 0, 1, 1], [], []>} : vector<128x128xbf16>, vector<128x256xbf16>, vector<128x256xf32> -> vector<128x256xf32>
    %c0_23 = arith.constant 0 : index
    %c0_24 = arith.constant 0 : index
    %33 = vector.load %arg10[%c0_23, %c0_24] : memref<1x256xf32, #tpu.memory_space<vmem>>, vector<1x256xf32>
    %34 = vector.broadcast %33 : vector<1x256xf32> to vector<128x256xf32>
    %35 = arith.addf %32, %34 : vector<128x256xf32>
    %36 = arith.negf %35 : vector<128x256xf32>
    %37 = math.exp %36 : vector<128x256xf32>
    %cst_25 = arith.constant 1.000000e+00 : f32
    %38 = vector.broadcast %cst_25 : f32 to vector<128x256xf32>
    %39 = arith.addf %38, %37 : vector<128x256xf32>
    %40 = arith.divf %38, %39 : vector<128x256xf32>
    %c0_26 = arith.constant 0 : index
    %c0_27 = arith.constant 0 : index
    %41 = vector.load %arg11[%c0_26, %c0_27] : memref<128x256xf32, #tpu.memory_space<vmem>>, vector<128x256xf32>
    tpu.vector_store %arg11[%c0_26, %c0_27], %40 {strides = array<i32>} : memref<128x256xf32, #tpu.memory_space<vmem>>, vector<128x256xf32>,
    %c0_28 = arith.constant 0 : index
    %c0_29 = arith.constant 0 : index
    %42 = vector.load %arg12[%c0_28, %c0_29] : memref<128x256xf32, #tpu.memory_space<vmem>>, vector<128x256xf32>
    tpu.vector_store %arg12[%c0_28, %c0_29], %14 {strides = array<i32>} : memref<128x256xf32, #tpu.memory_space<vmem>>, vector<128x256xf32>,
    return
  }
  func.func @transform_0(%arg0: i32) -> (i32, i32) {
    %c0_i32 = arith.constant 0 : i32
    %c0_i32_0 = arith.constant 0 : i32
    return %arg0, %c0_i32 : i32, i32
  }
  func.func @transform_1(%arg0: i32) -> (i32, i32) {
    %c0_i32 = arith.constant 0 : i32
    %c0_i32_0 = arith.constant 0 : i32
    return %arg0, %c0_i32 : i32, i32
  }
  func.func @transform_2(%arg0: i32) -> (i32, i32) {
    %c0_i32 = arith.constant 0 : i32
    %c0_i32_0 = arith.constant 0 : i32
    %c0_i32_1 = arith.constant 0 : i32
    return %c0_i32, %c0_i32_0 : i32, i32
  }
  func.func @transform_3(%arg0: i32) -> (i32, i32) {
    %c0_i32 = arith.constant 0 : i32
    %c0_i32_0 = arith.constant 0 : i32
    %c0_i32_1 = arith.constant 0 : i32
    return %c0_i32, %c0_i32_0 : i32, i32
  }
  func.func @transform_4(%arg0: i32) -> (i32, i32) {
    %c0_i32 = arith.constant 0 : i32
    %c0_i32_0 = arith.constant 0 : i32
    %c0_i32_1 = arith.constant 0 : i32
    return %c0_i32, %c0_i32_0 : i32, i32
  }
  func.func @transform_5(%arg0: i32) -> (i32, i32) {
    %c0_i32 = arith.constant 0 : i32
    %c0_i32_0 = arith.constant 0 : i32
    %c0_i32_1 = arith.constant 0 : i32
    return %c0_i32, %c0_i32_0 : i32, i32
  }
  func.func @transform_6(%arg0: i32) -> (i32, i32) {
    %c0_i32 = arith.constant 0 : i32
    %c0_i32_0 = arith.constant 0 : i32
    %c0_i32_1 = arith.constant 0 : i32
    return %c0_i32, %c0_i32_0 : i32, i32
  }
  func.func @transform_7(%arg0: i32) -> (i32, i32) {
    %c0_i32 = arith.constant 0 : i32
    %c0_i32_0 = arith.constant 0 : i32
    %c0_i32_1 = arith.constant 0 : i32
    return %c0_i32, %c0_i32_0 : i32, i32
  }
  func.func @transform_8(%arg0: i32) -> (i32, i32) {
    %c0_i32 = arith.constant 0 : i32
    %c0_i32_0 = arith.constant 0 : i32
    %c0_i32_1 = arith.constant 0 : i32
    return %c0_i32, %c0_i32_0 : i32, i32
  }
  func.func @transform_9(%arg0: i32) -> (i32, i32) {
    %c0_i32 = arith.constant 0 : i32
    %c0_i32_0 = arith.constant 0 : i32
    %c0_i32_1 = arith.constant 0 : i32
    return %c0_i32, %c0_i32_0 : i32, i32
  }
  func.func @transform_10(%arg0: i32) -> (i32, i32) {
    %c0_i32 = arith.constant 0 : i32
    %c0_i32_0 = arith.constant 0 : i32
    return %arg0, %c0_i32 : i32, i32
  }
  func.func @transform_11(%arg0: i32) -> (i32, i32) {
    %c0_i32 = arith.constant 0 : i32
    %c0_i32_0 = arith.constant 0 : i32
    return %arg0, %c0_i32 : i32, i32
  }
}

</mosaic_0001>

<llo_original>
// kernel: vae_forward.1
$region0: #{vae_forward.1}
  #allocation0 [shape = 'u32[]', space=smem, size = 0x4, offset = 0x4, fixed_abs, tag = 'smem constant byte address 0x4 - core index']
  #allocation1 [shape = 'u32[144,128]{1,0:T(1,128)}', space=vmem, size = 0x12000, scoped, tag = 'internal scratch']
  %s0 = inlined_call_operand.vmem [shape: f32[256,256], index: 0, kind: input, shape index: {}]
  %s1 = inlined_call_operand.vmem [shape: f32[256,32], index: 1, kind: input, shape index: {}]
  %s2 = inlined_call_operand.vmem [shape: bf16[256,128], index: 2, kind: input, shape index: {}]
  %s3 = inlined_call_operand.vmem [shape: f32[1,128], index: 3, kind: input, shape index: {}]
  %s4 = inlined_call_operand.vmem [shape: bf16[128,256], index: 4, kind: input, shape index: {}]
  %s5 = inlined_call_operand.vmem [shape: f32[1,256], index: 5, kind: input, shape index: {}]
  %s6 = inlined_call_operand.vmem [shape: bf16[128,128], index: 6, kind: input, shape index: {}]
  %s7 = inlined_call_operand.vmem [shape: f32[1,128], index: 7, kind: input, shape index: {}]
  %s8 = inlined_call_operand.vmem [shape: bf16[128,256], index: 8, kind: input, shape index: {}]
  %s9 = inlined_call_operand.vmem [shape: f32[1,256], index: 9, kind: input, shape index: {}]
  %s10 = inlined_call_operand.hbm [shape: f32[256,256], index: 10, kind: output, shape index: {0}]
  %s11 = inlined_call_operand.vmem [shape: f32[256,256], index: 11, kind: output, shape index: {1}]
  %12 = xla_tuple %s10, %s11
  %s13 = sld [smem:[#allocation0]]
  $region81: #{vae_forward.1} parent=0
    _
  %s15 = ssub.s32 1, %s13
  %s16 = scalar_select 0, %s15, %s13
  $region1: #{vae_forward.1} parent=0
    #allocation2 [shape = 'u8[262144]{0}', space=vmem, size = 0x40000, scoped, tag = 'output window, operand 0']
    #allocation3 [shape = 's32[2]{0}', space=sflag, size = 0x8, scoped, tag = 'scoped memory for vae_forward.1']
    %17 = vsyncpa [#allocation3], 0
    %s18 = scalar_lea.sflag [#allocation3], 1
    %19 = vsyncpa %s18, 0
    loop: start=0, step=1, limit=4
    $region2: #{vae_forward.1} parent=1 // loop_pre_header
      _
    $region3: #{vae_forward.1} parent=1 // loop_header
      %s21 = sphi 0, %s25
      %p22 = scmp.ge.s32.totalorder %s21, 4
      %s31 = sphi 0, %s33
      %s34 = sphi 0, %s31
      %s35 = sphi 0, %s34
      %s51 = sphi 0, %s35
      %s57 = sphi 0, %s59
      %s60 = sphi 0, %s57
      %s61 = sphi 0, %s60
      %s77 = sphi 0, %s61
      %s81 = sphi 0, %s81
      %s83 = sphi 0, %s81
      %s84 = sphi 0, %s83
      %s98 = sphi 0, %s84
      %s102 = sphi 0, %s102
      %s104 = sphi 0, %s102
      %s105 = sphi 0, %s104
      %s119 = sphi 0, %s105
      %s123 = sphi 0, %s123
      %s125 = sphi 0, %s123
      %s126 = sphi 0, %s125
      %s140 = sphi 0, %s126
      %s144 = sphi 0, %s144
      %s146 = sphi 0, %s144
      %s147 = sphi 0, %s146
      %s161 = sphi 0, %s147
      %s165 = sphi 0, %s165
      %s167 = sphi 0, %s165
      %s168 = sphi 0, %s167
      %s182 = sphi 0, %s168
      %s186 = sphi 0, %s186
      %s188 = sphi 0, %s186
      %s189 = sphi 0, %s188
      %s203 = sphi 0, %s189
      %s207 = sphi 0, %s207
      %s209 = sphi 0, %s207
      %s210 = sphi 0, %s209
      %s224 = sphi 0, %s210
      %s228 = sphi 0, %s228
      %s230 = sphi 0, %s228
      %s231 = sphi 0, %s230
      %s245 = sphi 0, %s231
      %s251 = sphi 0, %s253
      %s254 = sphi 0, %s251
      %s255 = sphi 0, %s254
      %s271 = sphi 0, %s255
      %s277 = sphi 0, %s279
      %s280 = sphi 0, %s277
      %s281 = sphi 0, %s280
      %s297 = sphi 0, %s281
    $region4: #{vae_forward.1} parent=1 // loop_header_branch
      %24 = sbr.rel (%p22) target = $region8
    $region5: #{vae_forward.1} parent=1 // loop_body
      %s26 = ssub.s32 %s21, 1
      %s27 = ssub.s32 %s21, 2
      %s28 = sadd.s32 %s21, 1
      %s29 = ssub.s32 %s21, %s28
      %p30 = scmp.eq.s32.totalorder %s29, 0
      %s32 = sadd.s32 %s31, 1
      %s33 = scalar_select %p30, %s31, %s32
      %p36 = pneg %p30
      %p37 = scmp.eq.s32.totalorder %s21, 1
      %p38 = por %p36, %p37
      %p39 = scmp.ne.s32.totalorder %s31, %s34
      %p40 = scmp.eq.s32.totalorder %s21, 0
      %p41 = por %p39, %p40
      %p42 = scmp.ne.s32.totalorder %s31, %s34
      %p43 = scmp.eq.s32.totalorder %s26, 1
      %p44 = por %p42, %p43
      %p45 = scmp.ne.s32.totalorder %s34, %s35
      %p46 = scmp.eq.s32.totalorder %s26, 0
      %p47 = por %p45, %p46
      %p48 = scmp.ne.s32.totalorder %s34, %s35
      %p49 = scmp.eq.s32.totalorder %s27, 1
      %p50 = por %p48, %p49
      %p52 = scmp.ne.s32.totalorder %s35, %s51
      %p53 = scmp.eq.s32.totalorder %s27, 0
      %p54 = por %p52, %p53
      %s55 = ssub.s32 %s21, %s28
      %p56 = scmp.eq.s32.totalorder %s55, 0
      %s58 = sadd.s32 %s57, 1
      %s59 = scalar_select %p56, %s57, %s58
      %p62 = pneg %p56
      %p63 = scmp.eq.s32.totalorder %s21, 1
      %p64 = por %p62, %p63
      %p65 = scmp.ne.s32.totalorder %s57, %s60
      %p66 = scmp.eq.s32.totalorder %s21, 0
      %p67 = por %p65, %p66
      %p68 = scmp.ne.s32.totalorder %s57, %s60
      %p69 = scmp.eq.s32.totalorder %s26, 1
      %p70 = por %p68, %p69
      %p71 = scmp.ne.s32.totalorder %s60, %s61
      %p72 = scmp.eq.s32.totalorder %s26, 0
      %p73 = por %p71, %p72
      %p74 = scmp.ne.s32.totalorder %s60, %s61
      %p75 = scmp.eq.s32.totalorder %s27, 1
      %p76 = por %p74, %p75
      %p78 = scmp.ne.s32.totalorder %s61, %s77
      %p79 = scmp.eq.s32.totalorder %s27, 0
      %p80 = por %p78, %p79
      %s82 = sadd.s32 %s81, 1
      %p85 = scmp.eq.s32.totalorder %s21, 1
      %p86 = scmp.ne.s32.totalorder %s81, %s83
      %p87 = scmp.eq.s32.totalorder %s21, 0
      %p88 = por %p86, %p87
      %p89 = scmp.ne.s32.totalorder %s81, %s83
      %p90 = scmp.eq.s32.totalorder %s26, 1
      %p91 = por %p89, %p90
      %p92 = scmp.ne.s32.totalorder %s83, %s84
      %p93 = scmp.eq.s32.totalorder %s26, 0
      %p94 = por %p92, %p93
      %p95 = scmp.ne.s32.totalorder %s83, %s84
      %p96 = scmp.eq.s32.totalorder %s27, 1
      %p97 = por %p95, %p96
      %p99 = scmp.ne.s32.totalorder %s84, %s98
      %p100 = scmp.eq.s32.totalorder %s27, 0
      %p101 = por %p99, %p100
      %s103 = sadd.s32 %s102, 1
      %p106 = scmp.eq.s32.totalorder %s21, 1
      %p107 = scmp.ne.s32.totalorder %s102, %s104
      %p108 = scmp.eq.s32.totalorder %s21, 0
      %p109 = por %p107, %p108
      %p110 = scmp.ne.s32.totalorder %s102, %s104
      %p111 = scmp.eq.s32.totalorder %s26, 1
      %p112 = por %p110, %p111
      %p113 = scmp.ne.s32.totalorder %s104, %s105
      %p114 = scmp.eq.s32.totalorder %s26, 0
      %p115 = por %p113, %p114
      %p116 = scmp.ne.s32.totalorder %s104, %s105
      %p117 = scmp.eq.s32.totalorder %s27, 1
      %p118 = por %p116, %p117
      %p120 = scmp.ne.s32.totalorder %s105, %s119
      %p121 = scmp.eq.s32.totalorder %s27, 0
      %p122 = por %p120, %p121
      %s124 = sadd.s32 %s123, 1
      %p127 = scmp.eq.s32.totalorder %s21, 1
      %p128 = scmp.ne.s32.totalorder %s123, %s125
      %p129 = scmp.eq.s32.totalorder %s21, 0
      %p130 = por %p128, %p129
      %p131 = scmp.ne.s32.totalorder %s123, %s125
      %p132 = scmp.eq.s32.totalorder %s26, 1
      %p133 = por %p131, %p132
      %p134 = scmp.ne.s32.totalorder %s125, %s126
      %p135 = scmp.eq.s32.totalorder %s26, 0
      %p136 = por %p134, %p135
      %p137 = scmp.ne.s32.totalorder %s125, %s126
      %p138 = scmp.eq.s32.totalorder %s27, 1
      %p139 = por %p137, %p138
      %p141 = scmp.ne.s32.totalorder %s126, %s140
      %p142 = scmp.eq.s32.totalorder %s27, 0
      %p143 = por %p141, %p142
      %s145 = sadd.s32 %s144, 1
      %p148 = scmp.eq.s32.totalorder %s21, 1
      %p149 = scmp.ne.s32.totalorder %s144, %s146
      %p150 = scmp.eq.s32.totalorder %s21, 0
      %p151 = por %p149, %p150
      %p152 = scmp.ne.s32.totalorder %s144, %s146
      %p153 = scmp.eq.s32.totalorder %s26, 1
      %p154 = por %p152, %p153
      %p155 = scmp.ne.s32.totalorder %s146, %s147
      %p156 = scmp.eq.s32.totalorder %s26, 0
      %p157 = por %p155, %p156
      %p158 = scmp.ne.s32.totalorder %s146, %s147
      %p159 = scmp.eq.s32.totalorder %s27, 1
      %p160 = por %p158, %p159
      %p162 = scmp.ne.s32.totalorder %s147, %s161
      %p163 = scmp.eq.s32.totalorder %s27, 0
      %p164 = por %p162, %p163
      %s166 = sadd.s32 %s165, 1
      %p169 = scmp.eq.s32.totalorder %s21, 1
      %p170 = scmp.ne.s32.totalorder %s165, %s167
      %p171 = scmp.eq.s32.totalorder %s21, 0
      %p172 = por %p170, %p171
      %p173 = scmp.ne.s32.totalorder %s165, %s167
      %p174 = scmp.eq.s32.totalorder %s26, 1
      %p175 = por %p173, %p174
      %p176 = scmp.ne.s32.totalorder %s167, %s168
      %p177 = scmp.eq.s32.totalorder %s26, 0
      %p178 = por %p176, %p177
      %p179 = scmp.ne.s32.totalorder %s167, %s168
      %p180 = scmp.eq.s32.totalorder %s27, 1
      %p181 = por %p179, %p180
      %p183 = scmp.ne.s32.totalorder %s168, %s182
      %p184 = scmp.eq.s32.totalorder %s27, 0
      %p185 = por %p183, %p184
      %s187 = sadd.s32 %s186, 1
      %p190 = scmp.eq.s32.totalorder %s21, 1
      %p191 = scmp.ne.s32.totalorder %s186, %s188
      %p192 = scmp.eq.s32.totalorder %s21, 0
      %p193 = por %p191, %p192
      %p194 = scmp.ne.s32.totalorder %s186, %s188
      %p195 = scmp.eq.s32.totalorder %s26, 1
      %p196 = por %p194, %p195
      %p197 = scmp.ne.s32.totalorder %s188, %s189
      %p198 = scmp.eq.s32.totalorder %s26, 0
      %p199 = por %p197, %p198
      %p200 = scmp.ne.s32.totalorder %s188, %s189
      %p201 = scmp.eq.s32.totalorder %s27, 1
      %p202 = por %p200, %p201
      %p204 = scmp.ne.s32.totalorder %s189, %s203
      %p205 = scmp.eq.s32.totalorder %s27, 0
      %p206 = por %p204, %p205
      %s208 = sadd.s32 %s207, 1
      %p211 = scmp.eq.s32.totalorder %s21, 1
      %p212 = scmp.ne.s32.totalorder %s207, %s209
      %p213 = scmp.eq.s32.totalorder %s21, 0
      %p214 = por %p212, %p213
      %p215 = scmp.ne.s32.totalorder %s207, %s209
      %p216 = scmp.eq.s32.totalorder %s26, 1
      %p217 = por %p215, %p216
      %p218 = scmp.ne.s32.totalorder %s209, %s210
      %p219 = scmp.eq.s32.totalorder %s26, 0
      %p220 = por %p218, %p219
      %p221 = scmp.ne.s32.totalorder %s209, %s210
      %p222 = scmp.eq.s32.totalorder %s27, 1
      %p223 = por %p221, %p222
      %p225 = scmp.ne.s32.totalorder %s210, %s224
      %p226 = scmp.eq.s32.totalorder %s27, 0
      %p227 = por %p225, %p226
      %s229 = sadd.s32 %s228, 1
      %p232 = scmp.eq.s32.totalorder %s21, 1
      %p233 = scmp.ne.s32.totalorder %s228, %s230
      %p234 = scmp.eq.s32.totalorder %s21, 0
      %p235 = por %p233, %p234
      %p236 = scmp.ne.s32.totalorder %s228, %s230
      %p237 = scmp.eq.s32.totalorder %s26, 1
      %p238 = por %p236, %p237
      %p239 = scmp.ne.s32.totalorder %s230, %s231
      %p240 = scmp.eq.s32.totalorder %s26, 0
      %p241 = por %p239, %p240
      %p242 = scmp.ne.s32.totalorder %s230, %s231
      %p243 = scmp.eq.s32.totalorder %s27, 1
      %p244 = por %p242, %p243
      %p246 = scmp.ne.s32.totalorder %s231, %s245
      %p247 = scmp.eq.s32.totalorder %s27, 0
      %p248 = por %p246, %p247
      %s249 = ssub.s32 %s21, %s28
      %p250 = scmp.eq.s32.totalorder %s249, 0
      %s252 = sadd.s32 %s251, 1
      %s253 = scalar_select %p250, %s251, %s252
      %p256 = pneg %p250
      %p257 = scmp.eq.s32.totalorder %s21, 1
      %p258 = por %p256, %p257
      %p259 = scmp.ne.s32.totalorder %s251, %s254
      %p260 = scmp.eq.s32.totalorder %s21, 0
      %p261 = por %p259, %p260
      %p262 = scmp.ne.s32.totalorder %s251, %s254
      %p263 = scmp.eq.s32.totalorder %s26, 1
      %p264 = por %p262, %p263
      %p265 = scmp.ne.s32.totalorder %s254, %s255
      %p266 = scmp.eq.s32.totalorder %s26, 0
      %p267 = por %p265, %p266
      %p268 = scmp.ne.s32.totalorder %s254, %s255
      %p269 = scmp.eq.s32.totalorder %s27, 1
      %p270 = por %p268, %p269
      %p272 = scmp.ne.s32.totalorder %s255, %s271
      %p273 = scmp.eq.s32.totalorder %s27, 0
      %p274 = por %p272, %p273
      %s275 = ssub.s32 %s21, %s28
      %p276 = scmp.eq.s32.totalorder %s275, 0
      %s278 = sadd.s32 %s277, 1
      %s279 = scalar_select %p276, %s277, %s278
      %p282 = pneg %p276
      %p283 = scmp.eq.s32.totalorder %s21, 1
      %p284 = por %p282, %p283
      %p285 = scmp.ne.s32.totalorder %s277, %s280
      %p286 = scmp.eq.s32.totalorder %s21, 0
      %p287 = por %p285, %p286
      %p288 = scmp.ne.s32.totalorder %s277, %s280
      %p289 = scmp.eq.s32.totalorder %s26, 1
      %p290 = por %p288, %p289
      %p291 = scmp.ne.s32.totalorder %s280, %s281
      %p292 = scmp.eq.s32.totalorder %s26, 0
      %p293 = por %p291, %p292
      %p294 = scmp.ne.s32.totalorder %s280, %s281
      %p295 = scmp.eq.s32.totalorder %s27, 1
      %p296 = por %p294, %p295
      %p298 = scmp.ne.s32.totalorder %s281, %s297
      %p299 = scmp.eq.s32.totalorder %s27, 0
      %p300 = por %p298, %p299
      %p301 = scmp.le.s32.totalorder 1, %s21
      %p302 = scmp.lt.s32.totalorder %s21, 3
      %p303 = pnand %p301, %p302
      %p304 = pneg %p303
      // Predicated region
      $region9: #{vae_forward.1} parent=5 // pred_check
        _
      $region10: #{vae_forward.1} parent=5 // pred_check_branch
        %306 = sbr.rel (%p303) target = $region12
      $region11: #{vae_forward.1} parent=5 // pred_region
        %s307 = ssub.s32 %s21, 1
        // Predicated region
        $region13: #{vae_forward.1} parent=11 // pred_check
          %p308 = pneg %p94
        $region14: #{vae_forward.1} parent=11 // pred_check_branch
          %310 = sbr.rel (%p308) target = $region16
        $region15: #{vae_forward.1} parent=11 // pred_region
          _
        $region16: #{vae_forward.1} parent=11 // pred_fallthru
          _
        // Predicated region
        $region17: #{vae_forward.1} parent=11 // pred_check
          %p311 = pneg %p115
        $region18: #{vae_forward.1} parent=11 // pred_check_branch
          %313 = sbr.rel (%p311) target = $region20
        $region19: #{vae_forward.1} parent=11 // pred_region
          _
        $region20: #{vae_forward.1} parent=11 // pred_fallthru
          _
        // Predicated region
        $region21: #{vae_forward.1} parent=11 // pred_check
          %p314 = pneg %p136
        $region22: #{vae_forward.1} parent=11 // pred_check_branch
          %316 = sbr.rel (%p314) target = $region24
        $region23: #{vae_forward.1} parent=11 // pred_region
          _
        $region24: #{vae_forward.1} parent=11 // pred_fallthru
          _
        // Predicated region
        $region25: #{vae_forward.1} parent=11 // pred_check
          %p317 = pneg %p157
        $region26: #{vae_forward.1} parent=11 // pred_check_branch
          %319 = sbr.rel (%p317) target = $region28
        $region27: #{vae_forward.1} parent=11 // pred_region
          _
        $region28: #{vae_forward.1} parent=11 // pred_fallthru
          _
        // Predicated region
        $region29: #{vae_forward.1} parent=11 // pred_check
          %p320 = pneg %p178
        $region30: #{vae_forward.1} parent=11 // pred_check_branch
          %322 = sbr.rel (%p320) target = $region32
        $region31: #{vae_forward.1} parent=11 // pred_region
          _
        $region32: #{vae_forward.1} parent=11 // pred_fallthru
          _
        // Predicated region
        $region33: #{vae_forward.1} parent=11 // pred_check
          %p323 = pneg %p199
        $region34: #{vae_forward.1} parent=11 // pred_check_branch
          %325 = sbr.rel (%p323) target = $region36
        $region35: #{vae_forward.1} parent=11 // pred_region
          _
        $region36: #{vae_forward.1} parent=11 // pred_fallthru
          _
        // Predicated region
        $region37: #{vae_forward.1} parent=11 // pred_check
          %p326 = pneg %p220
        $region38: #{vae_forward.1} parent=11 // pred_check_branch
          %328 = sbr.rel (%p326) target = $region40
        $region39: #{vae_forward.1} parent=11 // pred_region
          _
        $region40: #{vae_forward.1} parent=11 // pred_fallthru
          _
        // Predicated region
        $region41: #{vae_forward.1} parent=11 // pred_check
          %p329 = pneg %p241
        $region42: #{vae_forward.1} parent=11 // pred_check_branch
          %331 = sbr.rel (%p329) target = $region44
        $region43: #{vae_forward.1} parent=11 // pred_region
          _
        $region44: #{vae_forward.1} parent=11 // pred_fallthru
          _
      $region12: #{vae_forward.1} parent=5 // pred_fallthru
        _
      %p332 = scmp.lt.s32.totalorder %s21, 2
      // Predicated region
      $region45: #{vae_forward.1} parent=5 // pred_check
        %p333 = pneg %p332
      $region46: #{vae_forward.1} parent=5 // pred_check_branch
        %335 = sbr.rel (%p333) target = $region48
      $region47: #{vae_forward.1} parent=5 // pred_region
        // Predicated region
        $region49: #{vae_forward.1} parent=47 // pred_check
          %p336 = pneg %p41
        $region50: #{vae_forward.1} parent=47 // pred_check_branch
          %338 = sbr.rel (%p336) target = $region52
        $region51: #{vae_forward.1} parent=47 // pred_region
          %s339 = smul.u32 16, %s21
          %p340 = scmp.lt.s32.totalorder %s339, 31
          %s341 = scalar_select %p340, %s339, 31
          %s342 = smul.addr %s341, 2
          %s343 = smul.addr %s342, 8
          %s344 = scalar_lea.vmem %s0, %s343
          %s345 = smul.u32 16, %s21
        $region52: #{vae_forward.1} parent=47 // pred_fallthru
          _
        // Predicated region
        $region53: #{vae_forward.1} parent=47 // pred_check
          %p346 = pneg %p67
        $region54: #{vae_forward.1} parent=47 // pred_check_branch
          %348 = sbr.rel (%p346) target = $region56
        $region55: #{vae_forward.1} parent=47 // pred_region
          %s349 = smul.u32 16, %s21
          %p350 = scmp.lt.s32.totalorder %s349, 31
          %s351 = scalar_select %p350, %s349, 31
          %s352 = smul.addr %s351, 8
          %s353 = scalar_lea.vmem %s1, %s352
          %s354 = smul.u32 16, %s21
        $region56: #{vae_forward.1} parent=47 // pred_fallthru
          _
      $region48: #{vae_forward.1} parent=5 // pred_fallthru
        _
      %p355 = scmp.le.s32.totalorder 1, %s21
      %p356 = scmp.lt.s32.totalorder %s21, 3
      %p357 = pnand %p355, %p356
      %p358 = pneg %p357
      // Predicated region
      $region57: #{vae_forward.1} parent=5 // pred_check
        _
      $region58: #{vae_forward.1} parent=5 // pred_check_branch
        %360 = sbr.rel (%p357) target = $region60
      $region59: #{vae_forward.1} parent=5 // pred_region
        %s361 = ssub.s32 %s21, 1
        %s362 = smul.u32 16, %s26
        %p363 = scmp.lt.s32.totalorder %s362, 31
        %s364 = scalar_select %p363, %s362, 31
        %s365 = smul.addr %s364, 2
        %s366 = smul.addr %s365, 8
        %s367 = scalar_lea.vmem %s0, %s366
        %p368 = pneg %p47
        %p369 = pneg %p44
        %s370 = smul.u32 16, %s26
        %p371 = scmp.lt.s32.totalorder %s370, 31
        %s372 = scalar_select %p371, %s370, 31
        %s373 = smul.addr %s372, 8
        %s374 = scalar_lea.vmem %s1, %s373
        %p375 = pneg %p73
        %p376 = pneg %p70
        %p377 = pneg %p94
        %p378 = pneg %p91
        %p379 = pneg %p115
        %p380 = pneg %p112
        %p381 = pneg %p136
        %p382 = pneg %p133
        %p383 = pneg %p157
        %p384 = pneg %p154
        %p385 = pneg %p178
        %p386 = pneg %p175
        %p387 = pneg %p199
        %p388 = pneg %p196
        %p389 = pneg %p220
        %p390 = pneg %p217
        %p391 = pneg %p241
        %p392 = pneg %p238
        %p393 = pneg %p267
        %p394 = pneg %p264
        %s395 = sand.u32 %s254, 1
        %s396 = scalar_lea.sflag [#allocation3], %s395
        %s397 = sand.u32 %s254, 1
        %s398 = smul.addr %s397, 256
        %s399 = scalar_lea.vmem [#allocation2], %s398
        %p400 = pneg %p293
        %p401 = pneg %p290
        %s402 = smul.u32 16, %s26
        %p403 = scmp.lt.s32.totalorder %s402, 31
        %s404 = scalar_select %p403, %s402, 31
        %s405 = smul.addr %s404, 2
        %s406 = smul.addr %s405, 8
        %s407 = scalar_lea.vmem %s11, %s406
        %s408 = smul.u32 16, %s26
        %p409 = scmp.lt.s32.totalorder %s408, 31
        %s410 = scalar_select %p409, %s408, 31
        %s411 = smul.addr %s410, 2
        %s412 = smul.addr %s411, 8
        %s413 = scalar_lea.vmem %s0, %s412
        %s414 = smul.u32 16, %s26
        %s415 = smul.u32 16, %s26
        %p416 = scmp.lt.s32.totalorder %s415, 31
        %s417 = scalar_select %p416, %s415, 31
        %s418 = smul.addr %s417, 8
        %s419 = scalar_lea.vmem %s1, %s418
        %s420 = smul.u32 16, %s26
        %s421 = smul.u32 16, %s26
        %s422 = smul.u32 16, %s26
        %p423 = scmp.lt.s32.totalorder %s422, 31
        %s424 = scalar_select %p423, %s422, 31
        %s425 = smul.addr %s424, 2
        %s426 = smul.addr %s425, 8
        %s427 = scalar_lea.vmem %s11, %s426
        %s428 = smul.u32 16, %s26
        %v430 = vld [vmem:[%s413] sm:$0xff]
        %v431 = vld [vmem:[%s413 + $0x8] sm:$0xff]
        %v432 = vld [vmem:[%s413 + $0x10] sm:$0xff]
        %v433 = vld [vmem:[%s413 + $0x18] sm:$0xff]
        %v434 = vld [vmem:[%s413 + $0x20] sm:$0xff]
        %v435 = vld [vmem:[%s413 + $0x28] sm:$0xff]
        %v436 = vld [vmem:[%s413 + $0x30] sm:$0xff]
        %v437 = vld [vmem:[%s413 + $0x38] sm:$0xff]
        %v438 = vld [vmem:[%s413 + $0x40] sm:$0xff]
        %v439 = vld [vmem:[%s413 + $0x48] sm:$0xff]
        %v440 = vld [vmem:[%s413 + $0x50] sm:$0xff]
        %v441 = vld [vmem:[%s413 + $0x58] sm:$0xff]
        %v442 = vld [vmem:[%s413 + $0x60] sm:$0xff]
        %v443 = vld [vmem:[%s413 + $0x68] sm:$0xff]
        %v444 = vld [vmem:[%s413 + $0x70] sm:$0xff]
        %v445 = vld [vmem:[%s413 + $0x78] sm:$0xff]
        %v446 = vld [vmem:[%s413 + $0x80] sm:$0xff]
        %v447 = vld [vmem:[%s413 + $0x88] sm:$0xff]
        %v448 = vld [vmem:[%s413 + $0x90] sm:$0xff]
        %v449 = vld [vmem:[%s413 + $0x98] sm:$0xff]
        %v450 = vld [vmem:[%s413 + $0xa0] sm:$0xff]
        %v451 = vld [vmem:[%s413 + $0xa8] sm:$0xff]
        %v452 = vld [vmem:[%s413 + $0xb0] sm:$0xff]
        %v453 = vld [vmem:[%s413 + $0xb8] sm:$0xff]
        %v454 = vld [vmem:[%s413 + $0xc0] sm:$0xff]
        %v455 = vld [vmem:[%s413 + $0xc8] sm:$0xff]
        %v456 = vld [vmem:[%s413 + $0xd0] sm:$0xff]
        %v457 = vld [vmem:[%s413 + $0xd8] sm:$0xff]
        %v458 = vld [vmem:[%s413 + $0xe0] sm:$0xff]
        %v459 = vld [vmem:[%s413 + $0xe8] sm:$0xff]
        %v460 = vld [vmem:[%s413 + $0xf0] sm:$0xff]
        %v461 = vld [vmem:[%s413 + $0xf8] sm:$0xff]
        %v462 = vpack.c.bf16 %v432, %v430
        %v463 = vpack.c.bf16 %v433, %v431
        %v464 = vpack.c.bf16 %v436, %v434
        %v465 = vpack.c.bf16 %v437, %v435
        %v466 = vpack.c.bf16 %v440, %v438
        %v467 = vpack.c.bf16 %v441, %v439
        %v468 = vpack.c.bf16 %v444, %v442
        %v469 = vpack.c.bf16 %v445, %v443
        %v470 = vpack.c.bf16 %v448, %v446
        %v471 = vpack.c.bf16 %v449, %v447
        %v472 = vpack.c.bf16 %v452, %v450
        %v473 = vpack.c.bf16 %v453, %v451
        %v474 = vpack.c.bf16 %v456, %v454
        %v475 = vpack.c.bf16 %v457, %v455
        %v476 = vpack.c.bf16 %v460, %v458
        %v477 = vpack.c.bf16 %v461, %v459
        %v478 = vld [vmem:[%s2] sm:$0xf]
        %v479 = vld [vmem:[%s2 + $0x4] sm:$0xf]
        %v480 = vld [vmem:[%s2 + $0x8] sm:$0xf]
        %v481 = vld [vmem:[%s2 + $0xc] sm:$0xf]
        %v482 = vld [vmem:[%s2 + $0x10] sm:$0xf]
        %v483 = vld [vmem:[%s2 + $0x14] sm:$0xf]
        %v484 = vld [vmem:[%s2 + $0x18] sm:$0xf]
        %v485 = vld [vmem:[%s2 + $0x1c] sm:$0xf]
        %v486 = vld [vmem:[%s2 + $0x20] sm:$0xf]
        %v487 = vld [vmem:[%s2 + $0x24] sm:$0xf]
        %v488 = vld [vmem:[%s2 + $0x28] sm:$0xf]
        %v489 = vld [vmem:[%s2 + $0x2c] sm:$0xf]
        %v490 = vld [vmem:[%s2 + $0x30] sm:$0xf]
        %v491 = vld [vmem:[%s2 + $0x34] sm:$0xf]
        %v492 = vld [vmem:[%s2 + $0x38] sm:$0xf]
        %v493 = vld [vmem:[%s2 + $0x3c] sm:$0xf]
        %v494 = vld [vmem:[%s2 + $0x40] sm:$0xf]
        %v495 = vld [vmem:[%s2 + $0x44] sm:$0xf]
        %v496 = vld [vmem:[%s2 + $0x48] sm:$0xf]
        %v497 = vld [vmem:[%s2 + $0x4c] sm:$0xf]
        %v498 = vld [vmem:[%s2 + $0x50] sm:$0xf]
        %v499 = vld [vmem:[%s2 + $0x54] sm:$0xf]
        %v500 = vld [vmem:[%s2 + $0x58] sm:$0xf]
        %v501 = vld [vmem:[%s2 + $0x5c] sm:$0xf]
        %v502 = vld [vmem:[%s2 + $0x60] sm:$0xf]
        %v503 = vld [vmem:[%s2 + $0x64] sm:$0xf]
        %v504 = vld [vmem:[%s2 + $0x68] sm:$0xf]
        %v505 = vld [vmem:[%s2 + $0x6c] sm:$0xf]
        %v506 = vld [vmem:[%s2 + $0x70] sm:$0xf]
        %v507 = vld [vmem:[%s2 + $0x74] sm:$0xf]
        %v508 = vld [vmem:[%s2 + $0x78] sm:$0xf]
        %v509 = vld [vmem:[%s2 + $0x7c] sm:$0xf]
        %v510 = vld [vmem:[%s3] sm:$0x1]
        %v512 = vlaneseq
        %v513 = vshrl.u32 %v512, 7
        %v514 = vsub.s32 0, %v513
        %v515 = vrot.slane %v510, %v514
        %v549 = vunpack.c.l.b16 %v478
        %v550 = vunpack.c.l.b16 %v479
        %v551 = vunpack.c.l.b16 %v480
        %v552 = vunpack.c.l.b16 %v481
        %v553 = vunpack.c.l.b16 %v482
        %v554 = vunpack.c.l.b16 %v483
        %v555 = vunpack.c.l.b16 %v484
        %v556 = vunpack.c.l.b16 %v485
        %v557 = vunpack.c.l.b16 %v486
        %v558 = vunpack.c.l.b16 %v487
        %v559 = vunpack.c.l.b16 %v488
        %v560 = vunpack.c.l.b16 %v489
        %v561 = vunpack.c.l.b16 %v490
        %v562 = vunpack.c.l.b16 %v491
        %v563 = vunpack.c.l.b16 %v492
        %v564 = vunpack.c.l.b16 %v493
        %v565 = vunpack.c.l.b16 %v494
        %v566 = vunpack.c.l.b16 %v495
        %v567 = vunpack.c.l.b16 %v496
        %v568 = vunpack.c.l.b16 %v497
        %v569 = vunpack.c.l.b16 %v498
        %v570 = vunpack.c.l.b16 %v499
        %v571 = vunpack.c.l.b16 %v500
        %v572 = vunpack.c.l.b16 %v501
        %v573 = vunpack.c.l.b16 %v502
        %v574 = vunpack.c.l.b16 %v503
        %v575 = vunpack.c.l.b16 %v504
        %v576 = vunpack.c.l.b16 %v505
        %v577 = vunpack.c.l.b16 %v506
        %v578 = vunpack.c.l.b16 %v507
        %v579 = vunpack.c.l.b16 %v508
        %v580 = vunpack.c.l.b16 %v509
        %v581 = vpack.c.b16 %v550, %v549
        %v582 = vpack.c.b16 %v552, %v551
        %v583 = vpack.c.b16 %v554, %v553
        %v584 = vpack.c.b16 %v556, %v555
        %v585 = vpack.c.b16 %v558, %v557
        %v586 = vpack.c.b16 %v560, %v559
        %v587 = vpack.c.b16 %v562, %v561
        %v588 = vpack.c.b16 %v564, %v563
        %v589 = vpack.c.b16 %v566, %v565
        %v590 = vpack.c.b16 %v568, %v567
        %v591 = vpack.c.b16 %v570, %v569
        %v592 = vpack.c.b16 %v572, %v571
        %v593 = vpack.c.b16 %v574, %v573
        %v594 = vpack.c.b16 %v576, %v575
        %v595 = vpack.c.b16 %v578, %v577
        %v596 = vpack.c.b16 %v580, %v579
        %613 = vmatprep.subr.bf16.mxu0 0
        %614 = vmatpush1.bf16.msra.mxu0 %v581
        %615 = vmatprep.subr.bf16.mxu0 0
        %616 = vmatpush1.bf16.msra.mxu0 %v582
        %617 = vmatprep.subr.bf16.mxu0 0
        %618 = vmatpush1.bf16.msra.mxu0 %v583
        %619 = vmatprep.subr.bf16.mxu0 0
        %620 = vmatpush1.bf16.msra.mxu0 %v584
        %621 = vmatprep.subr.bf16.mxu0 0
        %622 = vmatpush1.bf16.msra.mxu0 %v585
        %623 = vmatprep.subr.bf16.mxu0 0
        %624 = vmatpush1.bf16.msra.mxu0 %v586
        %625 = vmatprep.subr.bf16.mxu0 0
        %626 = vmatpush1.bf16.msra.mxu0 %v587
        %627 = vmatprep.subr.bf16.mxu0 0
        %628 = vmatpush1.bf16.msra.mxu0 %v588
        %629 = vmatprep.subr.bf16.mxu0 0
        %630 = vmatpush1.bf16.msra.mxu0 %v589
        %631 = vmatprep.subr.bf16.mxu0 0
        %632 = vmatpush1.bf16.msra.mxu0 %v590
        %633 = vmatprep.subr.bf16.mxu0 0
        %634 = vmatpush1.bf16.msra.mxu0 %v591
        %635 = vmatprep.subr.bf16.mxu0 0
        %636 = vmatpush1.bf16.msra.mxu0 %v592
        %637 = vmatprep.subr.bf16.mxu0 0
        %638 = vmatpush1.bf16.msra.mxu0 %v593
        %639 = vmatprep.subr.bf16.mxu0 0
        %640 = vmatpush1.bf16.msra.mxu0 %v594
        %641 = vmatprep.subr.bf16.mxu0 0
        %642 = vmatpush1.bf16.msra.mxu0 %v595
        %643 = vmatprep.subr.bf16.mxu0 0
        %644 = vmatpush1.bf16.msra.mxu0 %v596
        %645 = vmatprep.mubr.bf16.mxu0 %v463
        %646 = vmatmul.mubr.bf16.gmra.mrb[0].mxu0 %v462
        %v647 = vpop.f32.mrb[0].mxu0
        %v648 = vadd.f32 %v515, %v647
        %v649 = vpop.f32.mrb[0].mxu0
        %v650 = vpop.f32.mrb[0].mxu0
        %v651 = vadd.f32 %v515, %v650
        %v652 = vpop.f32.mrb[0].mxu0
        %653 = vmatprep.mubr.bf16.mxu0 %v465
        %654 = vmatmul.mubr.bf16.gmra.mrb[0].mxu0 %v464
        %v655 = vpop.f32.mrb[0].mxu0
        %v656 = vadd.f32 %v515, %v655
        %v657 = vpop.f32.mrb[0].mxu0
        %v658 = vpop.f32.mrb[0].mxu0
        %v659 = vadd.f32 %v515, %v658
        %v660 = vpop.f32.mrb[0].mxu0
        %661 = vmatprep.mubr.bf16.mxu0 %v467
        %662 = vmatmul.mubr.bf16.gmra.mrb[0].mxu0 %v466
        %v663 = vpop.f32.mrb[0].mxu0
        %v664 = vadd.f32 %v515, %v663
        %v665 = vpop.f32.mrb[0].mxu0
        %v666 = vpop.f32.mrb[0].mxu0
        %v667 = vadd.f32 %v515, %v666
        %v668 = vpop.f32.mrb[0].mxu0
        %669 = vmatprep.mubr.bf16.mxu0 %v469
        %670 = vmatmul.mubr.bf16.gmra.mrb[0].mxu0 %v468
        %v671 = vpop.f32.mrb[0].mxu0
        %v672 = vadd.f32 %v515, %v671
        %v673 = vpop.f32.mrb[0].mxu0
        %v674 = vpop.f32.mrb[0].mxu0
        %v675 = vadd.f32 %v515, %v674
        %v676 = vpop.f32.mrb[0].mxu0
        %677 = vmatprep.mubr.bf16.mxu0 %v471
        %678 = vmatmul.mubr.bf16.gmra.mrb[0].mxu0 %v470
        %v679 = vpop.f32.mrb[0].mxu0
        %v680 = vadd.f32 %v515, %v679
        %v681 = vpop.f32.mrb[0].mxu0
        %v682 = vpop.f32.mrb[0].mxu0
        %v683 = vadd.f32 %v515, %v682
        %v684 = vpop.f32.mrb[0].mxu0
        %685 = vmatprep.mubr.bf16.mxu0 %v473
        %686 = vmatmul.mubr.bf16.gmra.mrb[0].mxu0 %v472
        %v687 = vpop.f32.mrb[0].mxu0
        %v688 = vadd.f32 %v515, %v687
        %v689 = vpop.f32.mrb[0].mxu0
        %v690 = vpop.f32.mrb[0].mxu0
        %v691 = vadd.f32 %v515, %v690
        %v692 = vpop.f32.mrb[0].mxu0
        %693 = vmatprep.mubr.bf16.mxu0 %v475
        %694 = vmatmul.mubr.bf16.gmra.mrb[0].mxu0 %v474
        %v695 = vpop.f32.mrb[0].mxu0
        %v696 = vadd.f32 %v515, %v695
        %v697 = vpop.f32.mrb[0].mxu0
        %v698 = vpop.f32.mrb[0].mxu0
        %v699 = vadd.f32 %v515, %v698
        %v700 = vpop.f32.mrb[0].mxu0
        %701 = vmatprep.mubr.bf16.mxu0 %v477
        %702 = vmatmul.mubr.bf16.gmra.mrb[0].mxu0 %v476
        %v703 = vpop.f32.mrb[0].mxu0
        %v704 = vadd.f32 %v515, %v703
        %v705 = vpop.f32.mrb[0].mxu0
        %v706 = vpop.f32.mrb[0].mxu0
        %v707 = vadd.f32 %v515, %v706
        %v708 = vpop.f32.mrb[0].mxu0
        %709 = vdwg.mxu0
        %v710 = vmax.f32 %v648, 0.0
        %v711 = vmax.f32 %v651, 0.0
        %v712 = vmax.f32 %v656, 0.0
        %v713 = vmax.f32 %v659, 0.0
        %v714 = vmax.f32 %v664, 0.0
        %v715 = vmax.f32 %v667, 0.0
        %v716 = vmax.f32 %v672, 0.0
        %v717 = vmax.f32 %v675, 0.0
        %v718 = vmax.f32 %v680, 0.0
        %v719 = vmax.f32 %v683, 0.0
        %v720 = vmax.f32 %v688, 0.0
        %v721 = vmax.f32 %v691, 0.0
        %v722 = vmax.f32 %v696, 0.0
        %v723 = vmax.f32 %v699, 0.0
        %v724 = vmax.f32 %v704, 0.0
        %v725 = vmax.f32 %v707, 0.0
        %v726 = vpack.c.bf16 %v711, %v710
        %v727 = vpack.c.bf16 %v713, %v712
        %v728 = vpack.c.bf16 %v715, %v714
        %v729 = vpack.c.bf16 %v717, %v716
        %v730 = vpack.c.bf16 %v719, %v718
        %v731 = vpack.c.bf16 %v721, %v720
        %v732 = vpack.c.bf16 %v723, %v722
        %v733 = vpack.c.bf16 %v725, %v724
        %v734 = vld [vmem:[%s4] sm:$0xff]
        %v735 = vld [vmem:[%s4 + $0x8] sm:$0xff]
        %v736 = vld [vmem:[%s4 + $0x10] sm:$0xff]
        %v737 = vld [vmem:[%s4 + $0x18] sm:$0xff]
        %v738 = vld [vmem:[%s4 + $0x20] sm:$0xff]
        %v739 = vld [vmem:[%s4 + $0x28] sm:$0xff]
        %v740 = vld [vmem:[%s4 + $0x30] sm:$0xff]
        %v741 = vld [vmem:[%s4 + $0x38] sm:$0xff]
        %v742 = vld [vmem:[%s4 + $0x40] sm:$0xff]
        %v743 = vld [vmem:[%s4 + $0x48] sm:$0xff]
        %v744 = vld [vmem:[%s4 + $0x50] sm:$0xff]
        %v745 = vld [vmem:[%s4 + $0x58] sm:$0xff]
        %v746 = vld [vmem:[%s4 + $0x60] sm:$0xff]
        %v747 = vld [vmem:[%s4 + $0x68] sm:$0xff]
        %v748 = vld [vmem:[%s4 + $0x70] sm:$0xff]
        %v749 = vld [vmem:[%s4 + $0x78] sm:$0xff]
        %v750 = vld [vmem:[%s5] sm:$0x3]
        %v752 = vlaneseq
        %v753 = vshrl.u32 %v752, 7
        %v754 = vsub.s32 0, %v753
        %v755 = vrot.slane %v750, %v754
        %v756 = vlaneseq
        %v757 = vshrl.u32 %v756, 7
        %v758 = vsub.s32 1, %v757
        %v759 = vrot.slane %v750, %v758
        %v778 = vunpack.c.l.b16 %v734
        %v779 = vunpack.c.h.b16 %v734
        %v780 = vunpack.c.l.b16 %v735
        %v781 = vunpack.c.h.b16 %v735
        %v782 = vunpack.c.l.b16 %v736
        %v783 = vunpack.c.h.b16 %v736
        %v784 = vunpack.c.l.b16 %v737
        %v785 = vunpack.c.h.b16 %v737
        %v786 = vunpack.c.l.b16 %v738
        %v787 = vunpack.c.h.b16 %v738
        %v788 = vunpack.c.l.b16 %v739
        %v789 = vunpack.c.h.b16 %v739
        %v790 = vunpack.c.l.b16 %v740
        %v791 = vunpack.c.h.b16 %v740
        %v792 = vunpack.c.l.b16 %v741
        %v793 = vunpack.c.h.b16 %v741
        %v794 = vunpack.c.l.b16 %v742
        %v795 = vunpack.c.h.b16 %v742
        %v796 = vunpack.c.l.b16 %v743
        %v797 = vunpack.c.h.b16 %v743
        %v798 = vunpack.c.l.b16 %v744
        %v799 = vunpack.c.h.b16 %v744
        %v800 = vunpack.c.l.b16 %v745
        %v801 = vunpack.c.h.b16 %v745
        %v802 = vunpack.c.l.b16 %v746
        %v803 = vunpack.c.h.b16 %v746
        %v804 = vunpack.c.l.b16 %v747
        %v805 = vunpack.c.h.b16 %v747
        %v806 = vunpack.c.l.b16 %v748
        %v807 = vunpack.c.h.b16 %v748
        %v808 = vunpack.c.l.b16 %v749
        %v809 = vunpack.c.h.b16 %v749
        %v810 = vpack.c.b16 %v780, %v778
        %v811 = vpack.c.b16 %v781, %v779
        %v812 = vpack.c.b16 %v784, %v782
        %v813 = vpack.c.b16 %v785, %v783
        %v814 = vpack.c.b16 %v788, %v786
        %v815 = vpack.c.b16 %v789, %v787
        %v816 = vpack.c.b16 %v792, %v790
        %v817 = vpack.c.b16 %v793, %v791
        %v818 = vpack.c.b16 %v796, %v794
        %v819 = vpack.c.b16 %v797, %v795
        %v820 = vpack.c.b16 %v800, %v798
        %v821 = vpack.c.b16 %v801, %v799
        %v822 = vpack.c.b16 %v804, %v802
        %v823 = vpack.c.b16 %v805, %v803
        %v824 = vpack.c.b16 %v808, %v806
        %v825 = vpack.c.b16 %v809, %v807
        %842 = vmatprep.subr.bf16.mxu0 %v811
        %843 = vmatpush1.bf16.msra.mxu0 %v810
        %844 = vmatprep.subr.bf16.mxu0 %v813
        %845 = vmatpush1.bf16.msra.mxu0 %v812
        %846 = vmatprep.subr.bf16.mxu0 %v815
        %847 = vmatpush1.bf16.msra.mxu0 %v814
        %848 = vmatprep.subr.bf16.mxu0 %v817
        %849 = vmatpush1.bf16.msra.mxu0 %v816
        %850 = vmatprep.subr.bf16.mxu0 %v819
        %851 = vmatpush1.bf16.msra.mxu0 %v818
        %852 = vmatprep.subr.bf16.mxu0 %v821
        %853 = vmatpush1.bf16.msra.mxu0 %v820
        %854 = vmatprep.subr.bf16.mxu0 %v823
        %855 = vmatpush1.bf16.msra.mxu0 %v822
        %856 = vmatprep.subr.bf16.mxu0 %v825
        %857 = vmatpush1.bf16.msra.mxu0 %v824
        %858 = vmatprep.subr.bf16.mxu0 0
        %859 = vmatpush1.bf16.msra.mxu0 0
        %860 = vmatprep.subr.bf16.mxu0 0
        %861 = vmatpush1.bf16.msra.mxu0 0
        %862 = vmatprep.subr.bf16.mxu0 0
        %863 = vmatpush1.bf16.msra.mxu0 0
        %864 = vmatprep.subr.bf16.mxu0 0
        %865 = vmatpush1.bf16.msra.mxu0 0
        %866 = vmatprep.subr.bf16.mxu0 0
        %867 = vmatpush1.bf16.msra.mxu0 0
        %868 = vmatprep.subr.bf16.mxu0 0
        %869 = vmatpush1.bf16.msra.mxu0 0
        %870 = vmatprep.subr.bf16.mxu0 0
        %871 = vmatpush1.bf16.msra.mxu0 0
        %872 = vmatprep.subr.bf16.mxu0 0
        %873 = vmatpush1.bf16.msra.mxu0 0
        %874 = vmatprep.mubr.bf16.mxu0 0
        %875 = vmatmul.mubr.bf16.gmra.mrb[0].mxu0 %v726
        %v876 = vpop.f32.mrb[0].mxu0
        %v877 = vadd.f32 %v755, %v876
        %v878 = vpop.f32.mrb[0].mxu0
        %v879 = vadd.f32 %v759, %v878
        %v880 = vpop.f32.mrb[0].mxu0
        %v881 = vadd.f32 %v755, %v880
        %v882 = vpop.f32.mrb[0].mxu0
        %v883 = vadd.f32 %v759, %v882
        %884 = vmatprep.mubr.bf16.mxu0 0
        %885 = vmatmul.mubr.bf16.gmra.mrb[0].mxu0 %v727
        %v886 = vpop.f32.mrb[0].mxu0
        %v887 = vadd.f32 %v755, %v886
        %v888 = vpop.f32.mrb[0].mxu0
        %v889 = vadd.f32 %v759, %v888
        %v890 = vpop.f32.mrb[0].mxu0
        %v891 = vadd.f32 %v755, %v890
        %v892 = vpop.f32.mrb[0].mxu0
        %v893 = vadd.f32 %v759, %v892
        %894 = vmatprep.mubr.bf16.mxu0 0
        %895 = vmatmul.mubr.bf16.gmra.mrb[0].mxu0 %v728
        %v896 = vpop.f32.mrb[0].mxu0
        %v897 = vadd.f32 %v755, %v896
        %v898 = vpop.f32.mrb[0].mxu0
        %v899 = vadd.f32 %v759, %v898
        %v900 = vpop.f32.mrb[0].mxu0
        %v901 = vadd.f32 %v755, %v900
        %v902 = vpop.f32.mrb[0].mxu0
        %v903 = vadd.f32 %v759, %v902
        %904 = vmatprep.mubr.bf16.mxu0 0
        %905 = vmatmul.mubr.bf16.gmra.mrb[0].mxu0 %v729
        %v906 = vpop.f32.mrb[0].mxu0
        %v907 = vadd.f32 %v755, %v906
        %v908 = vpop.f32.mrb[0].mxu0
        %v909 = vadd.f32 %v759, %v908
        %v910 = vpop.f32.mrb[0].mxu0
        %v911 = vadd.f32 %v755, %v910
        %v912 = vpop.f32.mrb[0].mxu0
        %v913 = vadd.f32 %v759, %v912
        %914 = vmatprep.mubr.bf16.mxu0 0
        %915 = vmatmul.mubr.bf16.gmra.mrb[0].mxu0 %v730
        %v916 = vpop.f32.mrb[0].mxu0
        %v917 = vadd.f32 %v755, %v916
        %v918 = vpop.f32.mrb[0].mxu0
        %v919 = vadd.f32 %v759, %v918
        %v920 = vpop.f32.mrb[0].mxu0
        %v921 = vadd.f32 %v755, %v920
        %v922 = vpop.f32.mrb[0].mxu0
        %v923 = vadd.f32 %v759, %v922
        %924 = vmatprep.mubr.bf16.mxu0 0
        %925 = vmatmul.mubr.bf16.gmra.mrb[0].mxu0 %v731
        %v926 = vpop.f32.mrb[0].mxu0
        %v927 = vadd.f32 %v755, %v926
        %v928 = vpop.f32.mrb[0].mxu0
        %v929 = vadd.f32 %v759, %v928
        %v930 = vpop.f32.mrb[0].mxu0
        %v931 = vadd.f32 %v755, %v930
        %v932 = vpop.f32.mrb[0].mxu0
        %v933 = vadd.f32 %v759, %v932
        %934 = vmatprep.mubr.bf16.mxu0 0
        %935 = vmatmul.mubr.bf16.gmra.mrb[0].mxu0 %v732
        %v936 = vpop.f32.mrb[0].mxu0
        %v937 = vadd.f32 %v755, %v936
        %v938 = vpop.f32.mrb[0].mxu0
        %v939 = vadd.f32 %v759, %v938
        %v940 = vpop.f32.mrb[0].mxu0
        %v941 = vadd.f32 %v755, %v940
        %v942 = vpop.f32.mrb[0].mxu0
        %v943 = vadd.f32 %v759, %v942
        %944 = vmatprep.mubr.bf16.mxu0 0
        %945 = vmatmul.mubr.bf16.gmra.mrb[0].mxu0 %v733
        %v946 = vpop.f32.mrb[0].mxu0
        %v947 = vadd.f32 %v755, %v946
        %v948 = vpop.f32.mrb[0].mxu0
        %v949 = vadd.f32 %v759, %v948
        %v950 = vpop.f32.mrb[0].mxu0
        %v951 = vadd.f32 %v755, %v950
        %v952 = vpop.f32.mrb[0].mxu0
        %v953 = vadd.f32 %v759, %v952
        %954 = vdwg.mxu0
        %v955 = vld [vmem:[%s419] sm:$0xff]
        %v956 = vld [vmem:[%s419 + $0x8] sm:$0xff]
        %v957 = vld [vmem:[%s419 + $0x10] sm:$0xff]
        %v958 = vld [vmem:[%s419 + $0x18] sm:$0xff]
        %v959 = vld [vmem:[%s419 + $0x20] sm:$0xff]
        %v960 = vld [vmem:[%s419 + $0x28] sm:$0xff]
        %v961 = vld [vmem:[%s419 + $0x30] sm:$0xff]
        %v962 = vld [vmem:[%s419 + $0x38] sm:$0xff]
        %v963 = vld [vmem:[%s419 + $0x40] sm:$0xff]
        %v964 = vld [vmem:[%s419 + $0x48] sm:$0xff]
        %v965 = vld [vmem:[%s419 + $0x50] sm:$0xff]
        %v966 = vld [vmem:[%s419 + $0x58] sm:$0xff]
        %v967 = vld [vmem:[%s419 + $0x60] sm:$0xff]
        %v968 = vld [vmem:[%s419 + $0x68] sm:$0xff]
        %v969 = vld [vmem:[%s419 + $0x70] sm:$0xff]
        %v970 = vld [vmem:[%s419 + $0x78] sm:$0xff]
        %vm971 = vcmask 261120
        %v972 = vsel %vm971, %v955, 0.0
        %v973 = vsel %vm971, %v956, 0.0
        %v974 = vsel %vm971, %v957, 0.0
        %v975 = vsel %vm971, %v958, 0.0
        %v976 = vsel %vm971, %v959, 0.0
        %v977 = vsel %vm971, %v960, 0.0
        %v978 = vsel %vm971, %v961, 0.0
        %v979 = vsel %vm971, %v962, 0.0
        %v980 = vsel %vm971, %v963, 0.0
        %v981 = vsel %vm971, %v964, 0.0
        %v982 = vsel %vm971, %v965, 0.0
        %v983 = vsel %vm971, %v966, 0.0
        %v984 = vsel %vm971, %v967, 0.0
        %v985 = vsel %vm971, %v968, 0.0
        %v986 = vsel %vm971, %v969, 0.0
        %v987 = vsel %vm971, %v970, 0.0
        %v988 = vmul.f32 %v972, %v879
        %v989 = vmul.f32 %v973, %v883
        %v990 = vmul.f32 %v974, %v889
        %v991 = vmul.f32 %v975, %v893
        %v992 = vmul.f32 %v976, %v899
        %v993 = vmul.f32 %v977, %v903
        %v994 = vmul.f32 %v978, %v909
        %v995 = vmul.f32 %v979, %v913
        %v996 = vmul.f32 %v980, %v919
        %v997 = vmul.f32 %v981, %v923
        %v998 = vmul.f32 %v982, %v929
        %v999 = vmul.f32 %v983, %v933
        %v1000 = vmul.f32 %v984, %v939
        %v1001 = vmul.f32 %v985, %v943
        %v1002 = vmul.f32 %v986, %v949
        %v1003 = vmul.f32 %v987, %v953
        %v1004 = vadd.f32 %v988, %v877
        %v1005 = vadd.f32 %v989, %v881
        %v1006 = vadd.f32 %v990, %v887
        %v1007 = vadd.f32 %v991, %v891
        %v1008 = vadd.f32 %v992, %v897
        %v1009 = vadd.f32 %v993, %v901
        %v1010 = vadd.f32 %v994, %v907
        %v1011 = vadd.f32 %v995, %v911
        %v1012 = vadd.f32 %v996, %v917
        %v1013 = vadd.f32 %v997, %v921
        %v1014 = vadd.f32 %v998, %v927
        %v1015 = vadd.f32 %v999, %v931
        %v1016 = vadd.f32 %v1000, %v937
        %v1017 = vadd.f32 %v1001, %v941
        %v1018 = vadd.f32 %v1002, %v947
        %v1019 = vadd.f32 %v1003, %v951
        %v1020 = vpack.c.bf16 %v1005, %v1004
        %v1021 = vpack.c.bf16 %v1007, %v1006
        %v1022 = vpack.c.bf16 %v1009, %v1008
        %v1023 = vpack.c.bf16 %v1011, %v1010
        %v1024 = vpack.c.bf16 %v1013, %v1012
        %v1025 = vpack.c.bf16 %v1015, %v1014
        %v1026 = vpack.c.bf16 %v1017, %v1016
        %v1027 = vpack.c.bf16 %v1019, %v1018
        %v1028 = vld [vmem:[%s6] sm:$0xf]
        %v1029 = vld [vmem:[%s6 + $0x4] sm:$0xf]
        %v1030 = vld [vmem:[%s6 + $0x8] sm:$0xf]
        %v1031 = vld [vmem:[%s6 + $0xc] sm:$0xf]
        %v1032 = vld [vmem:[%s6 + $0x10] sm:$0xf]
        %v1033 = vld [vmem:[%s6 + $0x14] sm:$0xf]
        %v1034 = vld [vmem:[%s6 + $0x18] sm:$0xf]
        %v1035 = vld [vmem:[%s6 + $0x1c] sm:$0xf]
        %v1036 = vld [vmem:[%s6 + $0x20] sm:$0xf]
        %v1037 = vld [vmem:[%s6 + $0x24] sm:$0xf]
        %v1038 = vld [vmem:[%s6 + $0x28] sm:$0xf]
        %v1039 = vld [vmem:[%s6 + $0x2c] sm:$0xf]
        %v1040 = vld [vmem:[%s6 + $0x30] sm:$0xf]
        %v1041 = vld [vmem:[%s6 + $0x34] sm:$0xf]
        %v1042 = vld [vmem:[%s6 + $0x38] sm:$0xf]
        %v1043 = vld [vmem:[%s6 + $0x3c] sm:$0xf]
        %v1044 = vld [vmem:[%s7] sm:$0x1]
        %v1046 = vlaneseq
        %v1047 = vshrl.u32 %v1046, 7
        %v1048 = vsub.s32 0, %v1047
        %v1049 = vrot.slane %v1044, %v1048
        %v1067 = vunpack.c.l.b16 %v1028
        %v1068 = vunpack.c.l.b16 %v1029
        %v1069 = vunpack.c.l.b16 %v1030
        %v1070 = vunpack.c.l.b16 %v1031
        %v1071 = vunpack.c.l.b16 %v1032
        %v1072 = vunpack.c.l.b16 %v1033
        %v1073 = vunpack.c.l.b16 %v1034
        %v1074 = vunpack.c.l.b16 %v1035
        %v1075 = vunpack.c.l.b16 %v1036
        %v1076 = vunpack.c.l.b16 %v1037
        %v1077 = vunpack.c.l.b16 %v1038
        %v1078 = vunpack.c.l.b16 %v1039
        %v1079 = vunpack.c.l.b16 %v1040
        %v1080 = vunpack.c.l.b16 %v1041
        %v1081 = vunpack.c.l.b16 %v1042
        %v1082 = vunpack.c.l.b16 %v1043
        %v1083 = vpack.c.b16 %v1068, %v1067
        %v1084 = vpack.c.b16 %v1070, %v1069
        %v1085 = vpack.c.b16 %v1072, %v1071
        %v1086 = vpack.c.b16 %v1074, %v1073
        %v1087 = vpack.c.b16 %v1076, %v1075
        %v1088 = vpack.c.b16 %v1078, %v1077
        %v1089 = vpack.c.b16 %v1080, %v1079
        %v1090 = vpack.c.b16 %v1082, %v1081
        %1099 = vmatprep.subr.bf16.mxu0 0
        %1100 = vmatpush1.bf16.msra.mxu0 %v1083
        %1101 = vmatprep.subr.bf16.mxu0 0
        %1102 = vmatpush1.bf16.msra.mxu0 %v1084
        %1103 = vmatprep.subr.bf16.mxu0 0
        %1104 = vmatpush1.bf16.msra.mxu0 %v1085
        %1105 = vmatprep.subr.bf16.mxu0 0
        %1106 = vmatpush1.bf16.msra.mxu0 %v1086
        %1107 = vmatprep.subr.bf16.mxu0 0
        %1108 = vmatpush1.bf16.msra.mxu0 %v1087
        %1109 = vmatprep.subr.bf16.mxu0 0
        %1110 = vmatpush1.bf16.msra.mxu0 %v1088
        %1111 = vmatprep.subr.bf16.mxu0 0
        %1112 = vmatpush1.bf16.msra.mxu0 %v1089
        %1113 = vmatprep.subr.bf16.mxu0 0
        %1114 = vmatpush1.bf16.msra.mxu0 %v1090
        %1115 = vmatprep.subr.bf16.mxu0 0
        %1116 = vmatpush1.bf16.msra.mxu0 0
        %1117 = vmatprep.subr.bf16.mxu0 0
        %1118 = vmatpush1.bf16.msra.mxu0 0
        %1119 = vmatprep.subr.bf16.mxu0 0
        %1120 = vmatpush1.bf16.msra.mxu0 0
        %1121 = vmatprep.subr.bf16.mxu0 0
        %1122 = vmatpush1.bf16.msra.mxu0 0
        %1123 = vmatprep.subr.bf16.mxu0 0
        %1124 = vmatpush1.bf16.msra.mxu0 0
        %1125 = vmatprep.subr.bf16.mxu0 0
        %1126 = vmatpush1.bf16.msra.mxu0 0
        %1127 = vmatprep.subr.bf16.mxu0 0
        %1128 = vmatpush1.bf16.msra.mxu0 0
        %1129 = vmatprep.subr.bf16.mxu0 0
        %1130 = vmatpush1.bf16.msra.mxu0 0
        %1131 = vmatprep.mubr.bf16.mxu0 0
        %1132 = vmatmul.mubr.bf16.gmra.mrb[0].mxu0 %v1020
        %v1133 = vpop.f32.mrb[0].mxu0
        %v1134 = vadd.f32 %v1049, %v1133
        %v1135 = vpop.f32.mrb[0].mxu0
        %v1136 = vpop.f32.mrb[0].mxu0
        %v1137 = vadd.f32 %v1049, %v1136
        %v1138 = vpop.f32.mrb[0].mxu0
        %1139 = vmatprep.mubr.bf16.mxu0 0
        %1140 = vmatmul.mubr.bf16.gmra.mrb[0].mxu0 %v1021
        %v1141 = vpop.f32.mrb[0].mxu0
        %v1142 = vadd.f32 %v1049, %v1141
        %v1143 = vpop.f32.mrb[0].mxu0
        %v1144 = vpop.f32.mrb[0].mxu0
        %v1145 = vadd.f32 %v1049, %v1144
        %v1146 = vpop.f32.mrb[0].mxu0
        %1147 = vmatprep.mubr.bf16.mxu0 0
        %1148 = vmatmul.mubr.bf16.gmra.mrb[0].mxu0 %v1022
        %v1149 = vpop.f32.mrb[0].mxu0
        %v1150 = vadd.f32 %v1049, %v1149
        %v1151 = vpop.f32.mrb[0].mxu0
        %v1152 = vpop.f32.mrb[0].mxu0
        %v1153 = vadd.f32 %v1049, %v1152
        %v1154 = vpop.f32.mrb[0].mxu0
        %1155 = vmatprep.mubr.bf16.mxu0 0
        %1156 = vmatmul.mubr.bf16.gmra.mrb[0].mxu0 %v1023
        %v1157 = vpop.f32.mrb[0].mxu0
        %v1158 = vadd.f32 %v1049, %v1157
        %v1159 = vpop.f32.mrb[0].mxu0
        %v1160 = vpop.f32.mrb[0].mxu0
        %v1161 = vadd.f32 %v1049, %v1160
        %v1162 = vpop.f32.mrb[0].mxu0
        %1163 = vmatprep.mubr.bf16.mxu0 0
        %1164 = vmatmul.mubr.bf16.gmra.mrb[0].mxu0 %v1024
        %v1165 = vpop.f32.mrb[0].mxu0
        %v1166 = vadd.f32 %v1049, %v1165
        %v1167 = vpop.f32.mrb[0].mxu0
        %v1168 = vpop.f32.mrb[0].mxu0
        %v1169 = vadd.f32 %v1049, %v1168
        %v1170 = vpop.f32.mrb[0].mxu0
        %1171 = vmatprep.mubr.bf16.mxu0 0
        %1172 = vmatmul.mubr.bf16.gmra.mrb[0].mxu0 %v1025
        %v1173 = vpop.f32.mrb[0].mxu0
        %v1174 = vadd.f32 %v1049, %v1173
        %v1175 = vpop.f32.mrb[0].mxu0
        %v1176 = vpop.f32.mrb[0].mxu0
        %v1177 = vadd.f32 %v1049, %v1176
        %v1178 = vpop.f32.mrb[0].mxu0
        %1179 = vmatprep.mubr.bf16.mxu0 0
        %1180 = vmatmul.mubr.bf16.gmra.mrb[0].mxu0 %v1026
        %v1181 = vpop.f32.mrb[0].mxu0
        %v1182 = vadd.f32 %v1049, %v1181
        %v1183 = vpop.f32.mrb[0].mxu0
        %v1184 = vpop.f32.mrb[0].mxu0
        %v1185 = vadd.f32 %v1049, %v1184
        %v1186 = vpop.f32.mrb[0].mxu0
        %1187 = vmatprep.mubr.bf16.mxu0 0
        %1188 = vmatmul.mubr.bf16.gmra.mrb[0].mxu0 %v1027
        %v1189 = vpop.f32.mrb[0].mxu0
        %v1190 = vadd.f32 %v1049, %v1189
        %v1191 = vpop.f32.mrb[0].mxu0
        %v1192 = vpop.f32.mrb[0].mxu0
        %v1193 = vadd.f32 %v1049, %v1192
        %v1194 = vpop.f32.mrb[0].mxu0
        %1195 = vdwg.mxu0
        %v1196 = vmax.f32 %v1134, 0.0
        %v1197 = vmax.f32 %v1137, 0.0
        %v1198 = vmax.f32 %v1142, 0.0
        %v1199 = vmax.f32 %v1145, 0.0
        %v1200 = vmax.f32 %v1150, 0.0
        %v1201 = vmax.f32 %v1153, 0.0
        %v1202 = vmax.f32 %v1158, 0.0
        %v1203 = vmax.f32 %v1161, 0.0
        %v1204 = vmax.f32 %v1166, 0.0
        %v1205 = vmax.f32 %v1169, 0.0
        %v1206 = vmax.f32 %v1174, 0.0
        %v1207 = vmax.f32 %v1177, 0.0
        %v1208 = vmax.f32 %v1182, 0.0
        %v1209 = vmax.f32 %v1185, 0.0
        %v1210 = vmax.f32 %v1190, 0.0
        %v1211 = vmax.f32 %v1193, 0.0
        %v1212 = vpack.c.bf16 %v1197, %v1196
        %v1213 = vpack.c.bf16 %v1199, %v1198
        %v1214 = vpack.c.bf16 %v1201, %v1200
        %v1215 = vpack.c.bf16 %v1203, %v1202
        %v1216 = vpack.c.bf16 %v1205, %v1204
        %v1217 = vpack.c.bf16 %v1207, %v1206
        %v1218 = vpack.c.bf16 %v1209, %v1208
        %v1219 = vpack.c.bf16 %v1211, %v1210
        %v1220 = vld [vmem:[%s8] sm:$0xff]
        %v1221 = vld [vmem:[%s8 + $0x8] sm:$0xff]
        %v1222 = vld [vmem:[%s8 + $0x10] sm:$0xff]
        %v1223 = vld [vmem:[%s8 + $0x18] sm:$0xff]
        %v1224 = vld [vmem:[%s8 + $0x20] sm:$0xff]
        %v1225 = vld [vmem:[%s8 + $0x28] sm:$0xff]
        %v1226 = vld [vmem:[%s8 + $0x30] sm:$0xff]
        %v1227 = vld [vmem:[%s8 + $0x38] sm:$0xff]
        %v1228 = vld [vmem:[%s8 + $0x40] sm:$0xff]
        %v1229 = vld [vmem:[%s8 + $0x48] sm:$0xff]
        %v1230 = vld [vmem:[%s8 + $0x50] sm:$0xff]
        %v1231 = vld [vmem:[%s8 + $0x58] sm:$0xff]
        %v1232 = vld [vmem:[%s8 + $0x60] sm:$0xff]
        %v1233 = vld [vmem:[%s8 + $0x68] sm:$0xff]
        %v1234 = vld [vmem:[%s8 + $0x70] sm:$0xff]
        %v1235 = vld [vmem:[%s8 + $0x78] sm:$0xff]
        %v1236 = vld [vmem:[%s9] sm:$0x3]
        %v1238 = vlaneseq
        %v1239 = vshrl.u32 %v1238, 7
        %v1240 = vsub.s32 0, %v1239
        %v1241 = vrot.slane %v1236, %v1240
        %v1242 = vlaneseq
        %v1243 = vshrl.u32 %v1242, 7
        %v1244 = vsub.s32 1, %v1243
        %v1245 = vrot.slane %v1236, %v1244
        %v1264 = vunpack.c.l.b16 %v1220
        %v1265 = vunpack.c.h.b16 %v1220
        %v1266 = vunpack.c.l.b16 %v1221
        %v1267 = vunpack.c.h.b16 %v1221
        %v1268 = vunpack.c.l.b16 %v1222
        %v1269 = vunpack.c.h.b16 %v1222
        %v1270 = vunpack.c.l.b16 %v1223
        %v1271 = vunpack.c.h.b16 %v1223
        %v1272 = vunpack.c.l.b16 %v1224
        %v1273 = vunpack.c.h.b16 %v1224
        %v1274 = vunpack.c.l.b16 %v1225
        %v1275 = vunpack.c.h.b16 %v1225
        %v1276 = vunpack.c.l.b16 %v1226
        %v1277 = vunpack.c.h.b16 %v1226
        %v1278 = vunpack.c.l.b16 %v1227
        %v1279 = vunpack.c.h.b16 %v1227
        %v1280 = vunpack.c.l.b16 %v1228
        %v1281 = vunpack.c.h.b16 %v1228
        %v1282 = vunpack.c.l.b16 %v1229
        %v1283 = vunpack.c.h.b16 %v1229
        %v1284 = vunpack.c.l.b16 %v1230
        %v1285 = vunpack.c.h.b16 %v1230
        %v1286 = vunpack.c.l.b16 %v1231
        %v1287 = vunpack.c.h.b16 %v1231
        %v1288 = vunpack.c.l.b16 %v1232
        %v1289 = vunpack.c.h.b16 %v1232
        %v1290 = vunpack.c.l.b16 %v1233
        %v1291 = vunpack.c.h.b16 %v1233
        %v1292 = vunpack.c.l.b16 %v1234
        %v1293 = vunpack.c.h.b16 %v1234
        %v1294 = vunpack.c.l.b16 %v1235
        %v1295 = vunpack.c.h.b16 %v1235
        %v1296 = vpack.c.b16 %v1266, %v1264
        %v1297 = vpack.c.b16 %v1267, %v1265
        %v1298 = vpack.c.b16 %v1270, %v1268
        %v1299 = vpack.c.b16 %v1271, %v1269
        %v1300 = vpack.c.b16 %v1274, %v1272
        %v1301 = vpack.c.b16 %v1275, %v1273
        %v1302 = vpack.c.b16 %v1278, %v1276
        %v1303 = vpack.c.b16 %v1279, %v1277
        %v1304 = vpack.c.b16 %v1282, %v1280
        %v1305 = vpack.c.b16 %v1283, %v1281
        %v1306 = vpack.c.b16 %v1286, %v1284
        %v1307 = vpack.c.b16 %v1287, %v1285
        %v1308 = vpack.c.b16 %v1290, %v1288
        %v1309 = vpack.c.b16 %v1291, %v1289
        %v1310 = vpack.c.b16 %v1294, %v1292
        %v1311 = vpack.c.b16 %v1295, %v1293
        %1328 = vmatprep.subr.bf16.mxu0 %v1297
        %1329 = vmatpush1.bf16.msra.mxu0 %v1296
        %1330 = vmatprep.subr.bf16.mxu0 %v1299
        %1331 = vmatpush1.bf16.msra.mxu0 %v1298
        %1332 = vmatprep.subr.bf16.mxu0 %v1301
        %1333 = vmatpush1.bf16.msra.mxu0 %v1300
        %1334 = vmatprep.subr.bf16.mxu0 %v1303
        %1335 = vmatpush1.bf16.msra.mxu0 %v1302
        %1336 = vmatprep.subr.bf16.mxu0 %v1305
        %1337 = vmatpush1.bf16.msra.mxu0 %v1304
        %1338 = vmatprep.subr.bf16.mxu0 %v1307
        %1339 = vmatpush1.bf16.msra.mxu0 %v1306
        %1340 = vmatprep.subr.bf16.mxu0 %v1309
        %1341 = vmatpush1.bf16.msra.mxu0 %v1308
        %1342 = vmatprep.subr.bf16.mxu0 %v1311
        %1343 = vmatpush1.bf16.msra.mxu0 %v1310
        %1344 = vmatprep.subr.bf16.mxu0 0
        %1345 = vmatpush1.bf16.msra.mxu0 0
        %1346 = vmatprep.subr.bf16.mxu0 0
        %1347 = vmatpush1.bf16.msra.mxu0 0
        %1348 = vmatprep.subr.bf16.mxu0 0
        %1349 = vmatpush1.bf16.msra.mxu0 0
        %1350 = vmatprep.subr.bf16.mxu0 0
        %1351 = vmatpush1.bf16.msra.mxu0 0
        %1352 = vmatprep.subr.bf16.mxu0 0
        %1353 = vmatpush1.bf16.msra.mxu0 0
        %1354 = vmatprep.subr.bf16.mxu0 0
        %1355 = vmatpush1.bf16.msra.mxu0 0
        %1356 = vmatprep.subr.bf16.mxu0 0
        %1357 = vmatpush1.bf16.msra.mxu0 0
        %1358 = vmatprep.subr.bf16.mxu0 0
        %1359 = vmatpush1.bf16.msra.mxu0 0
        %1360 = vmatprep.mubr.bf16.mxu0 0
        %1361 = vmatmul.mubr.bf16.gmra.mrb[0].mxu0 %v1212
        %v1362 = vpop.f32.mrb[0].mxu0
        %v1363 = vadd.f32 %v1241, %v1362
        %v1364 = vpop.f32.mrb[0].mxu0
        %v1365 = vadd.f32 %v1245, %v1364
        %v1366 = vpop.f32.mrb[0].mxu0
        %v1367 = vadd.f32 %v1241, %v1366
        %v1368 = vpop.f32.mrb[0].mxu0
        %v1369 = vadd.f32 %v1245, %v1368
        %1370 = vmatprep.mubr.bf16.mxu0 0
        %1371 = vmatmul.mubr.bf16.gmra.mrb[0].mxu0 %v1213
        %v1372 = vpop.f32.mrb[0].mxu0
        %v1373 = vadd.f32 %v1241, %v1372
        %v1374 = vpop.f32.mrb[0].mxu0
        %v1375 = vadd.f32 %v1245, %v1374
        %v1376 = vpop.f32.mrb[0].mxu0
        %v1377 = vadd.f32 %v1241, %v1376
        %v1378 = vpop.f32.mrb[0].mxu0
        %v1379 = vadd.f32 %v1245, %v1378
        %1380 = vmatprep.mubr.bf16.mxu0 0
        %1381 = vmatmul.mubr.bf16.gmra.mrb[0].mxu0 %v1214
        %v1382 = vpop.f32.mrb[0].mxu0
        %v1383 = vadd.f32 %v1241, %v1382
        %v1384 = vpop.f32.mrb[0].mxu0
        %v1385 = vadd.f32 %v1245, %v1384
        %v1386 = vpop.f32.mrb[0].mxu0
        %v1387 = vadd.f32 %v1241, %v1386
        %v1388 = vpop.f32.mrb[0].mxu0
        %v1389 = vadd.f32 %v1245, %v1388
        %1390 = vmatprep.mubr.bf16.mxu0 0
        %1391 = vmatmul.mubr.bf16.gmra.mrb[0].mxu0 %v1215
        %v1392 = vpop.f32.mrb[0].mxu0
        %v1393 = vadd.f32 %v1241, %v1392
        %v1394 = vpop.f32.mrb[0].mxu0
        %v1395 = vadd.f32 %v1245, %v1394
        %v1396 = vpop.f32.mrb[0].mxu0
        %v1397 = vadd.f32 %v1241, %v1396
        %v1398 = vpop.f32.mrb[0].mxu0
        %v1399 = vadd.f32 %v1245, %v1398
        %1400 = vmatprep.mubr.bf16.mxu0 0
        %1401 = vmatmul.mubr.bf16.gmra.mrb[0].mxu0 %v1216
        %v1402 = vpop.f32.mrb[0].mxu0
        %v1403 = vadd.f32 %v1241, %v1402
        %v1404 = vpop.f32.mrb[0].mxu0
        %v1405 = vadd.f32 %v1245, %v1404
        %v1406 = vpop.f32.mrb[0].mxu0
        %v1407 = vadd.f32 %v1241, %v1406
        %v1408 = vpop.f32.mrb[0].mxu0
        %v1409 = vadd.f32 %v1245, %v1408
        %1410 = vmatprep.mubr.bf16.mxu0 0
        %1411 = vmatmul.mubr.bf16.gmra.mrb[0].mxu0 %v1217
        %v1412 = vpop.f32.mrb[0].mxu0
        %v1413 = vadd.f32 %v1241, %v1412
        %v1414 = vpop.f32.mrb[0].mxu0
        %v1415 = vadd.f32 %v1245, %v1414
        %v1416 = vpop.f32.mrb[0].mxu0
        %v1417 = vadd.f32 %v1241, %v1416
        %v1418 = vpop.f32.mrb[0].mxu0
        %v1419 = vadd.f32 %v1245, %v1418
        %1420 = vmatprep.mubr.bf16.mxu0 0
        %1421 = vmatmul.mubr.bf16.gmra.mrb[0].mxu0 %v1218
        %v1422 = vpop.f32.mrb[0].mxu0
        %v1423 = vadd.f32 %v1241, %v1422
        %v1424 = vpop.f32.mrb[0].mxu0
        %v1425 = vadd.f32 %v1245, %v1424
        %v1426 = vpop.f32.mrb[0].mxu0
        %v1427 = vadd.f32 %v1241, %v1426
        %v1428 = vpop.f32.mrb[0].mxu0
        %v1429 = vadd.f32 %v1245, %v1428
        %1430 = vmatprep.mubr.bf16.mxu0 0
        %1431 = vmatmul.mubr.bf16.gmra.mrb[0].mxu0 %v1219
        %v1432 = vpop.f32.mrb[0].mxu0
        %v1433 = vadd.f32 %v1241, %v1432
        %v1434 = vpop.f32.mrb[0].mxu0
        %v1435 = vadd.f32 %v1245, %v1434
        %v1436 = vpop.f32.mrb[0].mxu0
        %v1437 = vadd.f32 %v1241, %v1436
        %v1438 = vpop.f32.mrb[0].mxu0
        %v1439 = vadd.f32 %v1245, %v1438
        %1440 = vdwg.mxu0
        %v1441 = vxor.u32 %v1363, 2147483648
        %v1442 = vxor.u32 %v1365, 2147483648
        %v1443 = vxor.u32 %v1367, 2147483648
        %v1444 = vxor.u32 %v1369, 2147483648
        %v1445 = vxor.u32 %v1373, 2147483648
        %v1446 = vxor.u32 %v1375, 2147483648
        %v1447 = vxor.u32 %v1377, 2147483648
        %v1448 = vxor.u32 %v1379, 2147483648
        %v1449 = vxor.u32 %v1383, 2147483648
        %v1450 = vxor.u32 %v1385, 2147483648
        %v1451 = vxor.u32 %v1387, 2147483648
        %v1452 = vxor.u32 %v1389, 2147483648
        %v1453 = vxor.u32 %v1393, 2147483648
        %v1454 = vxor.u32 %v1395, 2147483648
        %v1455 = vxor.u32 %v1397, 2147483648
        %v1456 = vxor.u32 %v1399, 2147483648
        %v1457 = vxor.u32 %v1403, 2147483648
        %v1458 = vxor.u32 %v1405, 2147483648
        %v1459 = vxor.u32 %v1407, 2147483648
        %v1460 = vxor.u32 %v1409, 2147483648
        %v1461 = vxor.u32 %v1413, 2147483648
        %v1462 = vxor.u32 %v1415, 2147483648
        %v1463 = vxor.u32 %v1417, 2147483648
        %v1464 = vxor.u32 %v1419, 2147483648
        %v1465 = vxor.u32 %v1423, 2147483648
        %v1466 = vxor.u32 %v1425, 2147483648
        %v1467 = vxor.u32 %v1427, 2147483648
        %v1468 = vxor.u32 %v1429, 2147483648
        %v1469 = vxor.u32 %v1433, 2147483648
        %v1470 = vxor.u32 %v1435, 2147483648
        %v1471 = vxor.u32 %v1437, 2147483648
        %v1472 = vxor.u32 %v1439, 2147483648
        %v1473 = vmul.f32 %v1441, 1.442695
        %v1474 = vpow.pop %v1473
        %v1475 = vmul.f32 %v1442, 1.442695
        %v1476 = vpow.pop %v1475
        %v1477 = vmul.f32 %v1443, 1.442695
        %v1478 = vpow.pop %v1477
        %v1479 = vmul.f32 %v1444, 1.442695
        %v1480 = vpow.pop %v1479
        %v1481 = vmul.f32 %v1445, 1.442695
        %v1482 = vpow.pop %v1481
        %v1483 = vmul.f32 %v1446, 1.442695
        %v1484 = vpow.pop %v1483
        %v1485 = vmul.f32 %v1447, 1.442695
        %v1486 = vpow.pop %v1485
        %v1487 = vmul.f32 %v1448, 1.442695
        %v1488 = vpow.pop %v1487
        %v1489 = vmul.f32 %v1449, 1.442695
        %v1490 = vpow.pop %v1489
        %v1491 = vmul.f32 %v1450, 1.442695
        %v1492 = vpow.pop %v1491
        %v1493 = vmul.f32 %v1451, 1.442695
        %v1494 = vpow.pop %v1493
        %v1495 = vmul.f32 %v1452, 1.442695
        %v1496 = vpow.pop %v1495
        %v1497 = vmul.f32 %v1453, 1.442695
        %v1498 = vpow.pop %v1497
        %v1499 = vmul.f32 %v1454, 1.442695
        %v1500 = vpow.pop %v1499
        %v1501 = vmul.f32 %v1455, 1.442695
        %v1502 = vpow.pop %v1501
        %v1503 = vmul.f32 %v1456, 1.442695
        %v1504 = vpow.pop %v1503
        %v1505 = vmul.f32 %v1457, 1.442695
        %v1506 = vpow.pop %v1505
        %v1507 = vmul.f32 %v1458, 1.442695
        %v1508 = vpow.pop %v1507
        %v1509 = vmul.f32 %v1459, 1.442695
        %v1510 = vpow.pop %v1509
        %v1511 = vmul.f32 %v1460, 1.442695
        %v1512 = vpow.pop %v1511
        %v1513 = vmul.f32 %v1461, 1.442695
        %v1514 = vpow.pop %v1513
        %v1515 = vmul.f32 %v1462, 1.442695
        %v1516 = vpow.pop %v1515
        %v1517 = vmul.f32 %v1463, 1.442695
        %v1518 = vpow.pop %v1517
        %v1519 = vmul.f32 %v1464, 1.442695
        %v1520 = vpow.pop %v1519
        %v1521 = vmul.f32 %v1465, 1.442695
        %v1522 = vpow.pop %v1521
        %v1523 = vmul.f32 %v1466, 1.442695
        %v1524 = vpow.pop %v1523
        %v1525 = vmul.f32 %v1467, 1.442695
        %v1526 = vpow.pop %v1525
        %v1527 = vmul.f32 %v1468, 1.442695
        %v1528 = vpow.pop %v1527
        %v1529 = vmul.f32 %v1469, 1.442695
        %v1530 = vpow.pop %v1529
        %v1531 = vmul.f32 %v1470, 1.442695
        %v1532 = vpow.pop %v1531
        %v1533 = vmul.f32 %v1471, 1.442695
        %v1534 = vpow.pop %v1533
        %v1535 = vmul.f32 %v1472, 1.442695
        %v1536 = vpow.pop %v1535
        %v1537 = vadd.f32 %v1474, 1.0
        %v1538 = vadd.f32 %v1476, 1.0
        %v1539 = vadd.f32 %v1478, 1.0
        %v1540 = vadd.f32 %v1480, 1.0
        %v1541 = vadd.f32 %v1482, 1.0
        %v1542 = vadd.f32 %v1484, 1.0
        %v1543 = vadd.f32 %v1486, 1.0
        %v1544 = vadd.f32 %v1488, 1.0
        %v1545 = vadd.f32 %v1490, 1.0
        %v1546 = vadd.f32 %v1492, 1.0
        %v1547 = vadd.f32 %v1494, 1.0
        %v1548 = vadd.f32 %v1496, 1.0
        %v1549 = vadd.f32 %v1498, 1.0
        %v1550 = vadd.f32 %v1500, 1.0
        %v1551 = vadd.f32 %v1502, 1.0
        %v1552 = vadd.f32 %v1504, 1.0
        %v1553 = vadd.f32 %v1506, 1.0
        %v1554 = vadd.f32 %v1508, 1.0
        %v1555 = vadd.f32 %v1510, 1.0
        %v1556 = vadd.f32 %v1512, 1.0
        %v1557 = vadd.f32 %v1514, 1.0
        %v1558 = vadd.f32 %v1516, 1.0
        %v1559 = vadd.f32 %v1518, 1.0
        %v1560 = vadd.f32 %v1520, 1.0
        %v1561 = vadd.f32 %v1522, 1.0
        %v1562 = vadd.f32 %v1524, 1.0
        %v1563 = vadd.f32 %v1526, 1.0
        %v1564 = vadd.f32 %v1528, 1.0
        %v1565 = vadd.f32 %v1530, 1.0
        %v1566 = vadd.f32 %v1532, 1.0
        %v1567 = vadd.f32 %v1534, 1.0
        %v1568 = vadd.f32 %v1536, 1.0
        %v1569 = vrcp.pop %v1537
        %v1570 = vmul.f32 1.0, %v1569
        %v1571 = vrcp.pop %v1538
        %v1572 = vmul.f32 1.0, %v1571
        %v1573 = vrcp.pop %v1539
        %v1574 = vmul.f32 1.0, %v1573
        %v1575 = vrcp.pop %v1540
        %v1576 = vmul.f32 1.0, %v1575
        %v1577 = vrcp.pop %v1541
        %v1578 = vmul.f32 1.0, %v1577
        %v1579 = vrcp.pop %v1542
        %v1580 = vmul.f32 1.0, %v1579
        %v1581 = vrcp.pop %v1543
        %v1582 = vmul.f32 1.0, %v1581
        %v1583 = vrcp.pop %v1544
        %v1584 = vmul.f32 1.0, %v1583
        %v1585 = vrcp.pop %v1545
        %v1586 = vmul.f32 1.0, %v1585
        %v1587 = vrcp.pop %v1546
        %v1588 = vmul.f32 1.0, %v1587
        %v1589 = vrcp.pop %v1547
        %v1590 = vmul.f32 1.0, %v1589
        %v1591 = vrcp.pop %v1548
        %v1592 = vmul.f32 1.0, %v1591
        %v1593 = vrcp.pop %v1549
        %v1594 = vmul.f32 1.0, %v1593
        %v1595 = vrcp.pop %v1550
        %v1596 = vmul.f32 1.0, %v1595
        %v1597 = vrcp.pop %v1551
        %v1598 = vmul.f32 1.0, %v1597
        %v1599 = vrcp.pop %v1552
        %v1600 = vmul.f32 1.0, %v1599
        %v1601 = vrcp.pop %v1553
        %v1602 = vmul.f32 1.0, %v1601
        %v1603 = vrcp.pop %v1554
        %v1604 = vmul.f32 1.0, %v1603
        %v1605 = vrcp.pop %v1555
        %v1606 = vmul.f32 1.0, %v1605
        %v1607 = vrcp.pop %v1556
        %v1608 = vmul.f32 1.0, %v1607
        %v1609 = vrcp.pop %v1557
        %v1610 = vmul.f32 1.0, %v1609
        %v1611 = vrcp.pop %v1558
        %v1612 = vmul.f32 1.0, %v1611
        %v1613 = vrcp.pop %v1559
        %v1614 = vmul.f32 1.0, %v1613
        %v1615 = vrcp.pop %v1560
        %v1616 = vmul.f32 1.0, %v1615
        %v1617 = vrcp.pop %v1561
        %v1618 = vmul.f32 1.0, %v1617
        %v1619 = vrcp.pop %v1562
        %v1620 = vmul.f32 1.0, %v1619
        %v1621 = vrcp.pop %v1563
        %v1622 = vmul.f32 1.0, %v1621
        %v1623 = vrcp.pop %v1564
        %v1624 = vmul.f32 1.0, %v1623
        %v1625 = vrcp.pop %v1565
        %v1626 = vmul.f32 1.0, %v1625
        %v1627 = vrcp.pop %v1566
        %v1628 = vmul.f32 1.0, %v1627
        %v1629 = vrcp.pop %v1567
        %v1630 = vmul.f32 1.0, %v1629
        %v1631 = vrcp.pop %v1568
        %v1632 = vmul.f32 1.0, %v1631
        %1633 = vst [vmem:[%s399] sm:$0xff] %v1570
        %1634 = vst [vmem:[%s399 + $0x8] sm:$0xff] %v1572
        %1635 = vst [vmem:[%s399 + $0x10] sm:$0xff] %v1574
        %1636 = vst [vmem:[%s399 + $0x18] sm:$0xff] %v1576
        %1637 = vst [vmem:[%s399 + $0x20] sm:$0xff] %v1578
        %1638 = vst [vmem:[%s399 + $0x28] sm:$0xff] %v1580
        %1639 = vst [vmem:[%s399 + $0x30] sm:$0xff] %v1582
        %1640 = vst [vmem:[%s399 + $0x38] sm:$0xff] %v1584
        %1641 = vst [vmem:[%s399 + $0x40] sm:$0xff] %v1586
        %1642 = vst [vmem:[%s399 + $0x48] sm:$0xff] %v1588
        %1643 = vst [vmem:[%s399 + $0x50] sm:$0xff] %v1590
        %1644 = vst [vmem:[%s399 + $0x58] sm:$0xff] %v1592
        %1645 = vst [vmem:[%s399 + $0x60] sm:$0xff] %v1594
        %1646 = vst [vmem:[%s399 + $0x68] sm:$0xff] %v1596
        %1647 = vst [vmem:[%s399 + $0x70] sm:$0xff] %v1598
        %1648 = vst [vmem:[%s399 + $0x78] sm:$0xff] %v1600
        %1649 = vst [vmem:[%s399 + $0x80] sm:$0xff] %v1602
        %1650 = vst [vmem:[%s399 + $0x88] sm:$0xff] %v1604
        %1651 = vst [vmem:[%s399 + $0x90] sm:$0xff] %v1606
        %1652 = vst [vmem:[%s399 + $0x98] sm:$0xff] %v1608
        %1653 = vst [vmem:[%s399 + $0xa0] sm:$0xff] %v1610
        %1654 = vst [vmem:[%s399 + $0xa8] sm:$0xff] %v1612
        %1655 = vst [vmem:[%s399 + $0xb0] sm:$0xff] %v1614
        %1656 = vst [vmem:[%s399 + $0xb8] sm:$0xff] %v1616
        %1657 = vst [vmem:[%s399 + $0xc0] sm:$0xff] %v1618
        %1658 = vst [vmem:[%s399 + $0xc8] sm:$0xff] %v1620
        %1659 = vst [vmem:[%s399 + $0xd0] sm:$0xff] %v1622
        %1660 = vst [vmem:[%s399 + $0xd8] sm:$0xff] %v1624
        %1661 = vst [vmem:[%s399 + $0xe0] sm:$0xff] %v1626
        %1662 = vst [vmem:[%s399 + $0xe8] sm:$0xff] %v1628
        %1663 = vst [vmem:[%s399 + $0xf0] sm:$0xff] %v1630
        %1664 = vst [vmem:[%s399 + $0xf8] sm:$0xff] %v1632
        %1665 = vst [vmem:[%s427] sm:$0xff] %v877
        %1666 = vst [vmem:[%s427 + $0x8] sm:$0xff] %v879
        %1667 = vst [vmem:[%s427 + $0x10] sm:$0xff] %v881
        %1668 = vst [vmem:[%s427 + $0x18] sm:$0xff] %v883
        %1669 = vst [vmem:[%s427 + $0x20] sm:$0xff] %v887
        %1670 = vst [vmem:[%s427 + $0x28] sm:$0xff] %v889
        %1671 = vst [vmem:[%s427 + $0x30] sm:$0xff] %v891
        %1672 = vst [vmem:[%s427 + $0x38] sm:$0xff] %v893
        %1673 = vst [vmem:[%s427 + $0x40] sm:$0xff] %v897
        %1674 = vst [vmem:[%s427 + $0x48] sm:$0xff] %v899
        %1675 = vst [vmem:[%s427 + $0x50] sm:$0xff] %v901
        %1676 = vst [vmem:[%s427 + $0x58] sm:$0xff] %v903
        %1677 = vst [vmem:[%s427 + $0x60] sm:$0xff] %v907
        %1678 = vst [vmem:[%s427 + $0x68] sm:$0xff] %v909
        %1679 = vst [vmem:[%s427 + $0x70] sm:$0xff] %v911
        %1680 = vst [vmem:[%s427 + $0x78] sm:$0xff] %v913
        %1681 = vst [vmem:[%s427 + $0x80] sm:$0xff] %v917
        %1682 = vst [vmem:[%s427 + $0x88] sm:$0xff] %v919
        %1683 = vst [vmem:[%s427 + $0x90] sm:$0xff] %v921
        %1684 = vst [vmem:[%s427 + $0x98] sm:$0xff] %v923
        %1685 = vst [vmem:[%s427 + $0xa0] sm:$0xff] %v927
        %1686 = vst [vmem:[%s427 + $0xa8] sm:$0xff] %v929
        %1687 = vst [vmem:[%s427 + $0xb0] sm:$0xff] %v931
        %1688 = vst [vmem:[%s427 + $0xb8] sm:$0xff] %v933
        %1689 = vst [vmem:[%s427 + $0xc0] sm:$0xff] %v937
        %1690 = vst [vmem:[%s427 + $0xc8] sm:$0xff] %v939
        %1691 = vst [vmem:[%s427 + $0xd0] sm:$0xff] %v941
        %1692 = vst [vmem:[%s427 + $0xd8] sm:$0xff] %v943
        %1693 = vst [vmem:[%s427 + $0xe0] sm:$0xff] %v947
        %1694 = vst [vmem:[%s427 + $0xe8] sm:$0xff] %v949
        %1695 = vst [vmem:[%s427 + $0xf0] sm:$0xff] %v951
        %1696 = vst [vmem:[%s427 + $0xf8] sm:$0xff] %v953
        %s1697 = sand.u32 %s254, 1
        %s1698 = scalar_lea.sflag [#allocation3], %s1697
        %s1699 = sand.u32 %s254, 1
        %s1700 = smul.addr %s1699, 256
        %s1701 = scalar_lea.vmem [#allocation2], %s1700
        %s1702 = smul.u32 16, %s26
        %p1703 = scmp.lt.s32.totalorder %s1702, 31
        %s1704 = scalar_select %p1703, %s1702, 31
        %s1705 = smul.addr %s1704, 2
        %s1706 = smul.addr %s1705, 8
        %s1707 = scalar_lea.vmem %s11, %s1706
        // Predicated region
        $region61: #{vae_forward.1} parent=59 // pred_check
          %p1708 = pneg %p264
        $region62: #{vae_forward.1} parent=59 // pred_check_branch
          %1710 = sbr.rel (%p1708) target = $region64
        $region63: #{vae_forward.1} parent=59 // pred_region
          %s1711 = smul.u32 16, %s26
          %s1713 = ssub.s32 4096, 4096
          %1714 = vsyncadd %s1698, %s1713
          %s1715 = smul.addr %s1711, 2
          %s1716 = smul.addr %s1715, 128
          %s1717 = scalar_lea.hbm %s10, %s1716
          %s1718 = sshll.u32 %s1701, 4
          %s1719 = int_to_ptr.vmem [resolvable:$true] %s1718
          %1724 = dma.vmem_to_hbm [thread:$0]  %s1719, 4096, %s1717, %s1698, 256, 256, 16
        $region64: #{vae_forward.1} parent=59 // pred_fallthru
          _
        // Predicated region
        $region65: #{vae_forward.1} parent=59 // pred_check
          %p1725 = pneg %p290
        $region66: #{vae_forward.1} parent=59 // pred_check_branch
          %1727 = sbr.rel (%p1725) target = $region68
        $region67: #{vae_forward.1} parent=59 // pred_region
          %s1728 = smul.u32 16, %s26
        $region68: #{vae_forward.1} parent=59 // pred_fallthru
          _
      $region60: #{vae_forward.1} parent=5 // pred_fallthru
        _
      %p1729 = scmp.le.s32.totalorder 2, %s21
      // Predicated region
      $region69: #{vae_forward.1} parent=5 // pred_check
        %p1730 = pneg %p1729
      $region70: #{vae_forward.1} parent=5 // pred_check_branch
        %1732 = sbr.rel (%p1730) target = $region72
      $region71: #{vae_forward.1} parent=5 // pred_region
        %s1733 = ssub.s32 %s21, 2
        // Predicated region
        $region73: #{vae_forward.1} parent=71 // pred_check
          %p1734 = pneg %p270
        $region74: #{vae_forward.1} parent=71 // pred_check_branch
          %1736 = sbr.rel (%p1734) target = $region76
        $region75: #{vae_forward.1} parent=71 // pred_region
          %s1737 = sand.u32 %s255, 1
          %s1738 = scalar_lea.sflag [#allocation3], %s1737
          %s1739 = sand.u32 %s255, 1
          %s1740 = smul.addr %s1739, 256
          %s1741 = scalar_lea.vmem [#allocation2], %s1740
          %1742 = dma.done %s1738, 4096
        $region76: #{vae_forward.1} parent=71 // pred_fallthru
          _
        // Predicated region
        $region77: #{vae_forward.1} parent=71 // pred_check
          %p1743 = pneg %p296
        $region78: #{vae_forward.1} parent=71 // pred_check_branch
          %1745 = sbr.rel (%p1743) target = $region80
        $region79: #{vae_forward.1} parent=71 // pred_region
          %s1746 = smul.u32 16, %s27
          %p1747 = scmp.lt.s32.totalorder %s1746, 31
          %s1748 = scalar_select %p1747, %s1746, 31
          %s1749 = smul.addr %s1748, 2
          %s1750 = smul.addr %s1749, 8
          %s1751 = scalar_lea.vmem %s11, %s1750
        $region80: #{vae_forward.1} parent=71 // pred_fallthru
          _
      $region72: #{vae_forward.1} parent=5 // pred_fallthru
        _
    $region6: #{vae_forward.1} parent=1 // loop_footer
      %s25 = sadd.s32 1, %s21
    $region7: #{vae_forward.1} parent=1 // loop_footer_branch
      %20 = sbr.rel target = $region3
    $region8: #{vae_forward.1} parent=1 // loop_exit
      _
    %1752 = vsyncpa [#allocation3], 1
    %s1753 = scalar_lea.sflag [#allocation3], 1
    %1754 = vsyncpa %s1753, 1

</llo_original>
